<compile_context>
chip_gen: v5e
topology: v5e:2x2
jax: 0.10.0
libtpu: 0.0.40
codegen_flags: <defaults>
</compile_context>

<pallas_src>
import functools

import jax
import jax.numpy as jnp
from jax.experimental import pallas as pl
from jax.experimental.pallas import tpu as pltpu

BN_EPS = 1e-5
NORM_EPS = 1e-12  # F.normalize clamp_min

_VMEM = pl.BlockSpec(memory_space=pltpu.MemorySpace.VMEM)
_SMEM = pl.BlockSpec(memory_space=pltpu.MemorySpace.SMEM)


# --------------------------------------------------------- in-kernel helpers

def _linear(x, w, b):
    return jnp.dot(x, w, preferred_element_type=jnp.float32) + b


def _mlp_bn(x, w1, b1, gamma, beta, w2, b2):
    # Linear -> BatchNorm1d (training mode: biased batch stats) -> ReLU -> Linear
    h = _linear(x, w1, b1)
    mean = jnp.mean(h, axis=0, keepdims=True)
    d = h - mean
    var = jnp.mean(d * d, axis=0, keepdims=True)
    hn = d * jax.lax.rsqrt(var + BN_EPS) * gamma + beta
    return _linear(jnp.maximum(hn, 0.0), w2, b2)


def _l2_normalize(x):
    # F.normalize(x, dim=1): x / max(||x||, eps) == x * rsqrt(max(||x||^2, eps^2))
    ss = jnp.sum(x * x, axis=1, keepdims=True)
    return x * jax.lax.rsqrt(jnp.maximum(ss, NORM_EPS * NORM_EPS))


# ------------------------------------------------------------- fused kernel

def _mean_shift_kernel(
        # ------------------------------ inputs ------------------------------
        imq_ref, imt_ref, perm_ref,
        q_bw, q_bb, q_w1, q_b1, q_g, q_be, q_w2, q_b2,      # encoder_q
        t_bw, t_bb, t_w1, t_b1, t_g, t_be, t_w2, t_b2,      # encoder_t (pre-EMA)
        p_w1, p_b1, p_g, p_be, p_w2, p_b2,                  # predict_q
        queue_ref, ptr_ref,
        # ------------------------------ outputs -----------------------------
        loss_ref, newq_ref,
        n_bw, n_bb, n_w1, n_b1, n_g, n_be, n_w2, n_b2,      # EMA'd encoder_t
        *, m, topk):
    f32 = jnp.float32

    # ---- 1) momentum (EMA) update of the target encoder; keep the updated
    #         values in vregs and reuse them for the target branch (single
    #         HBM read of the parameters, aliased write-back).
    def ema(t_ref, q_ref, out_ref):
        v = t_ref[...] * m + (1.0 - m) * q_ref[...]
        out_ref[...] = v
        return v

    e_bw = ema(t_bw, q_bw, n_bw)
    e_bb = ema(t_bb, q_bb, n_bb)
    e_w1 = ema(t_w1, q_w1, n_w1)
    e_b1 = ema(t_b1, q_b1, n_b1)
    e_g = ema(t_g, q_g, n_g)
    e_be = ema(t_be, q_be, n_be)
    e_w2 = ema(t_w2, q_w2, n_w2)
    e_b2 = ema(t_b2, q_b2, n_b2)

    # ---- 2) query branch: backbone -> embedding_f -> predict_q -> L2 norm
    feats_q = jnp.maximum(_linear(imq_ref[...], q_bw[...], q_bb[...]), 0.0)
    emb_q = _mlp_bn(feats_q, q_w1[...], q_b1[...], q_g[...], q_be[...],
                    q_w2[...], q_b2[...])
    query = _l2_normalize(
        _mlp_bn(emb_q, p_w1[...], p_b1[...], p_g[...], p_be[...],
                p_w2[...], p_b2[...]))

    # ---- 3) target branch on the ShuffleBN-shuffled batch with the EMA'd
    #         params, then un-shuffle via a (B,B) one-hot permutation matmul.
    #         (The two backbone matmuls use different weights, so they are two
    #         dots inside this one kernel; batch=8 rows bounds MXU occupancy.)
    feats_t = jnp.maximum(_linear(imt_ref[...], e_bw, e_bb), 0.0)
    emb_t = _mlp_bn(feats_t, e_w1, e_b1, e_g, e_be, e_w2, e_b2)
    current_target = jnp.dot(perm_ref[...], _l2_normalize(emb_t),
                             preferred_element_type=f32)

    # ---- 4) dequeue_and_enqueue: write the whole queue through the aliased
    #         output ref and overwrite B rows at queue_ptr in place.
    bsz = imq_ref.shape[0]
    ptr = pl.multiple_of(ptr_ref[0], bsz)        # mem_bank_size % batch == 0
    newq_ref[...] = queue_ref[...]
    newq_ref[pl.ds(ptr, bsz), :] = current_target.astype(newq_ref.dtype)
    targets = newq_ref[...]                      # queue AFTER enqueue (reference order)

    # ---- 5) loss: distances, top-k smallest of dist_t, gather dist_q, mean.
    dn = (((1,), (1,)), ((), ()))
    dist_t = 2.0 - 2.0 * jax.lax.dot_general(current_target, targets, dn,
                                             preferred_element_type=f32)
    dist_q = 2.0 - 2.0 * jax.lax.dot_general(query, targets, dn,
                                             preferred_element_type=f32)

    b, k = dist_t.shape
    col = jax.lax.broadcasted_iota(jnp.int32, (b, k), 1)   # hoisted out of loop
    big = jnp.float32(1e30)
    acc = jnp.zeros((b, 1), f32)
    # Exact iterative masked argmin (first-index tie break, like torch.topk for
    # distinct values); gather dist_q at the same index via a one-hot reduce.
    for _ in range(topk):
        mval = jnp.min(dist_t, axis=1, keepdims=True)
        is_min = dist_t == mval
        first_idx = jnp.min(jnp.where(is_min, col, k), axis=1, keepdims=True)
        onehot = col == first_idx
        acc = acc + jnp.sum(jnp.where(onehot, dist_q, 0.0), axis=1, keepdims=True)
        dist_t = jnp.where(onehot, big, dist_t)

    # loss = ((nn_dist_q.sum(dim=1) / topk)).mean()
    loss_ref[...] = jnp.sum(acc, axis=(0, 1), keepdims=True) / (topk * b)


# --------------------------------------------------------- model plumbing

def init_mlp(key, inp_dim, hidden_dim, out_dim):
    k1, k2 = jax.random.split(key)
    return dict(
        w1=jax.random.normal(k1, (inp_dim, hidden_dim), jnp.float32) * 0.02,
        b1=jnp.zeros((1, hidden_dim), jnp.float32),
        gamma=jnp.ones((1, hidden_dim), jnp.float32),
        beta=jnp.zeros((1, hidden_dim), jnp.float32),
        w2=jax.random.normal(k2, (hidden_dim, out_dim), jnp.float32) * 0.02,
        b2=jnp.zeros((1, out_dim), jnp.float32),
    )


def init_encoder(key, in_feats, num_ftrs, hidden_dim, proj_dim):
    kb, ke = jax.random.split(key)
    return dict(
        backbone=dict(
            w=jax.random.normal(kb, (in_feats, num_ftrs), jnp.float32) * 0.02,
            b=jnp.zeros((1, num_ftrs), jnp.float32),
        ),
        embedding=init_mlp(ke, num_ftrs, hidden_dim, proj_dim),
    )


def _enc_leaves(p):
    e = p["embedding"]
    return (p["backbone"]["w"], p["backbone"]["b"],
            e["w1"], e["b1"], e["gamma"], e["beta"], e["w2"], e["b2"])


def _enc_from_leaves(ls):
    return dict(backbone=dict(w=ls[0], b=ls[1]),
                embedding=dict(w1=ls[2], b1=ls[3], gamma=ls[4], beta=ls[5],
                               w2=ls[6], b2=ls[7]))


def _mlp_leaves(p):
    return (p["w1"], p["b1"], p["gamma"], p["beta"], p["w2"], p["b2"])


def mean_shift_forward(state, im_q, im_t, shuffle_key, *, m, topk):
    enc_q, enc_t, predict_q, queue, queue_ptr = state
    bsz = im_q.shape[0]
    mem_bank = queue.shape[0]

    # ShuffleBN indices (glue; torch.randperm equivalent) + one-hot unshuffle
    # matrix consumed inside the kernel.
    fwd_ids = jax.random.permutation(shuffle_key, bsz)
    bwd_ids = jnp.argsort(fwd_ids)
    perm = (bwd_ids[:, None] == jnp.arange(bsz)[None, :]).astype(jnp.float32)

    x_q = im_q.reshape(bsz, -1)
    x_t = im_t[fwd_ids].reshape(bsz, -1)

    q_leaves = _enc_leaves(enc_q)
    t_leaves = _enc_leaves(enc_t)
    p_leaves = _mlp_leaves(predict_q)

    inputs = (x_q, x_t, perm) + q_leaves + t_leaves + p_leaves + (queue, queue_ptr)

    out_shape = (
        jax.ShapeDtypeStruct((1, 1), jnp.float32),            # loss
        jax.ShapeDtypeStruct(queue.shape, queue.dtype),       # updated queue
    ) + tuple(jax.ShapeDtypeStruct(l.shape, l.dtype) for l in t_leaves)

    t_start = 3 + len(q_leaves)                               # enc_t inputs: 11..18
    queue_idx = t_start + len(t_leaves) + len(p_leaves)       # queue input: 25
    aliases = {queue_idx: 1}                                  # queue updated in place
    aliases.update({t_start + i: 2 + i for i in range(len(t_leaves))})  # enc_t in place

    outs = pl.pallas_call(
        functools.partial(_mean_shift_kernel, m=m, topk=topk),
        out_shape=out_shape,
        in_specs=[_VMEM] * (len(inputs) - 1) + [_SMEM],       # queue_ptr lives in SMEM
        out_specs=tuple([_VMEM] * len(out_shape)),
        input_output_aliases=aliases,
    )(*inputs)

    loss = outs[0][0, 0]
    new_queue = outs[1]
    new_enc_t = _enc_from_leaves(tuple(outs[2:]))
    new_ptr = ((queue_ptr + bsz) % mem_bank).astype(jnp.int32)

    # TODO(synk): BatchNorm running statistics are not tracked; training-mode BN
    # uses batch stats so the forward output is unaffected.
    new_state = (enc_q, new_enc_t, predict_q, new_queue, new_ptr)
    return loss, new_state


if __name__ == "__main__":
    key = jax.random.PRNGKey(0)

    # small shapes consistent with the module
    B, C, H, W = 8, 3, 16, 16
    NUM_FTRS = 32
    DIM = 16                      # proj_dim ("dim" in the module)
    HIDDEN = NUM_FTRS * 2         # hidden_dim = num_ftrs * 2
    MEM_BANK = 64                 # mem_bank_size % batch == 0
    TOPK = 5
    MOMENTUM = 0.99

    k_enc, k_pred, k_queue, k_imq, k_imt, k_shuffle = jax.random.split(key, 6)

    encoder_q = init_encoder(k_enc, C * H * W, NUM_FTRS, HIDDEN, DIM)
    encoder_t = jax.tree_util.tree_map(jnp.copy, encoder_q)   # deepcopy equivalent
    predict_q = init_mlp(k_pred, DIM, HIDDEN, DIM)

    queue = jax.random.normal(k_queue, (MEM_BANK, DIM), jnp.float32)
    queue = queue / jnp.maximum(
        jnp.linalg.norm(queue, axis=1, keepdims=True), NORM_EPS)
    queue_ptr = jnp.zeros((1,), jnp.int32)

    im_q = jax.random.normal(k_imq, (B, C, H, W), jnp.float32)
    im_t = jax.random.normal(k_imt, (B, C, H, W), jnp.float32)

    state = (encoder_q, encoder_t, predict_q, queue, queue_ptr)

    fwd = jax.jit(functools.partial(mean_shift_forward, m=MOMENTUM, topk=TOPK))
    loss, new_state = fwd(state, im_q, im_t, k_shuffle)
    loss = jax.block_until_ready(loss)
    assert jnp.isfinite(loss)
    print("KERNEL_OK")
</pallas_src>

<mosaic_0001>
module attributes {stable_mosaic.version = 11 : i64} {
  func.func @_mean_shift_kernel(%arg0: memref<8x768xf32, #tpu.memory_space<vmem>>, %arg1: memref<8x768xf32, #tpu.memory_space<vmem>>, %arg2: memref<8x8xf32, #tpu.memory_space<vmem>>, %arg3: memref<768x32xf32, #tpu.memory_space<vmem>>, %arg4: memref<1x32xf32, #tpu.memory_space<vmem>>, %arg5: memref<32x64xf32, #tpu.memory_space<vmem>>, %arg6: memref<1x64xf32, #tpu.memory_space<vmem>>, %arg7: memref<1x64xf32, #tpu.memory_space<vmem>>, %arg8: memref<1x64xf32, #tpu.memory_space<vmem>>, %arg9: memref<64x16xf32, #tpu.memory_space<vmem>>, %arg10: memref<1x16xf32, #tpu.memory_space<vmem>>, %arg11: memref<768x32xf32, #tpu.memory_space<vmem>>, %arg12: memref<1x32xf32, #tpu.memory_space<vmem>>, %arg13: memref<32x64xf32, #tpu.memory_space<vmem>>, %arg14: memref<1x64xf32, #tpu.memory_space<vmem>>, %arg15: memref<1x64xf32, #tpu.memory_space<vmem>>, %arg16: memref<1x64xf32, #tpu.memory_space<vmem>>, %arg17: memref<64x16xf32, #tpu.memory_space<vmem>>, %arg18: memref<1x16xf32, #tpu.memory_space<vmem>>, %arg19: memref<16x64xf32, #tpu.memory_space<vmem>>, %arg20: memref<1x64xf32, #tpu.memory_space<vmem>>, %arg21: memref<1x64xf32, #tpu.memory_space<vmem>>, %arg22: memref<1x64xf32, #tpu.memory_space<vmem>>, %arg23: memref<64x16xf32, #tpu.memory_space<vmem>>, %arg24: memref<1x16xf32, #tpu.memory_space<vmem>>, %arg25: memref<64x16xf32, #tpu.memory_space<vmem>>, %arg26: memref<1xi32, #tpu.memory_space<smem>>, %arg27: memref<1x1xf32, #tpu.memory_space<vmem>>, %arg28: memref<64x16xf32, #tpu.memory_space<vmem>>, %arg29: memref<768x32xf32, #tpu.memory_space<vmem>>, %arg30: memref<1x32xf32, #tpu.memory_space<vmem>>, %arg31: memref<32x64xf32, #tpu.memory_space<vmem>>, %arg32: memref<1x64xf32, #tpu.memory_space<vmem>>, %arg33: memref<1x64xf32, #tpu.memory_space<vmem>>, %arg34: memref<1x64xf32, #tpu.memory_space<vmem>>, %arg35: memref<64x16xf32, #tpu.memory_space<vmem>>, %arg36: memref<1x16xf32, #tpu.memory_space<vmem>>) attributes {dimension_semantics = [], scalar_prefetch = 0 : i64, scratch_operands = 0 : i64, tpu.core_type = #tpu.core_type<tc>} {
    %c0 = arith.constant 0 : index
    %c0_0 = arith.constant 0 : index
    %0 = vector.load %arg11[%c0, %c0_0] : memref<768x32xf32, #tpu.memory_space<vmem>>, vector<768x32xf32>
    %cst = arith.constant 9.900000e-01 : f32
    %1 = vector.broadcast %cst : f32 to vector<768x32xf32>
    %2 = arith.mulf %0, %1 : vector<768x32xf32>
    %c0_1 = arith.constant 0 : index
    %c0_2 = arith.constant 0 : index
    %3 = vector.load %arg3[%c0_1, %c0_2] : memref<768x32xf32, #tpu.memory_space<vmem>>, vector<768x32xf32>
    %cst_3 = arith.constant 0.00999999977 : f32
    %4 = vector.broadcast %cst_3 : f32 to vector<768x32xf32>
    %5 = arith.mulf %4, %3 : vector<768x32xf32>
    %6 = arith.addf %2, %5 : vector<768x32xf32>
    %c0_4 = arith.constant 0 : index
    %c0_5 = arith.constant 0 : index
    %7 = vector.load %arg29[%c0_4, %c0_5] : memref<768x32xf32, #tpu.memory_space<vmem>>, vector<768x32xf32>
    tpu.vector_store %arg29[%c0_4, %c0_5], %6 {strides = array<i32>} : memref<768x32xf32, #tpu.memory_space<vmem>>, vector<768x32xf32>,
    %c0_6 = arith.constant 0 : index
    %c0_7 = arith.constant 0 : index
    %8 = vector.load %arg12[%c0_6, %c0_7] : memref<1x32xf32, #tpu.memory_space<vmem>>, vector<1x32xf32>
    %cst_8 = arith.constant 9.900000e-01 : f32
    %9 = vector.broadcast %cst_8 : f32 to vector<1x32xf32>
    %10 = arith.mulf %8, %9 : vector<1x32xf32>
    %c0_9 = arith.constant 0 : index
    %c0_10 = arith.constant 0 : index
    %11 = vector.load %arg4[%c0_9, %c0_10] : memref<1x32xf32, #tpu.memory_space<vmem>>, vector<1x32xf32>
    %cst_11 = arith.constant 0.00999999977 : f32
    %12 = vector.broadcast %cst_11 : f32 to vector<1x32xf32>
    %13 = arith.mulf %12, %11 : vector<1x32xf32>
    %14 = arith.addf %10, %13 : vector<1x32xf32>
    %c0_12 = arith.constant 0 : index
    %c0_13 = arith.constant 0 : index
    %15 = vector.load %arg30[%c0_12, %c0_13] : memref<1x32xf32, #tpu.memory_space<vmem>>, vector<1x32xf32>
    tpu.vector_store %arg30[%c0_12, %c0_13], %14 {strides = array<i32>} : memref<1x32xf32, #tpu.memory_space<vmem>>, vector<1x32xf32>,
    %c0_14 = arith.constant 0 : index
    %c0_15 = arith.constant 0 : index
    %16 = vector.load %arg13[%c0_14, %c0_15] : memref<32x64xf32, #tpu.memory_space<vmem>>, vector<32x64xf32>
    %cst_16 = arith.constant 9.900000e-01 : f32
    %17 = vector.broadcast %cst_16 : f32 to vector<32x64xf32>
    %18 = arith.mulf %16, %17 : vector<32x64xf32>
    %c0_17 = arith.constant 0 : index
    %c0_18 = arith.constant 0 : index
    %19 = vector.load %arg5[%c0_17, %c0_18] : memref<32x64xf32, #tpu.memory_space<vmem>>, vector<32x64xf32>
    %cst_19 = arith.constant 0.00999999977 : f32
    %20 = vector.broadcast %cst_19 : f32 to vector<32x64xf32>
    %21 = arith.mulf %20, %19 : vector<32x64xf32>
    %22 = arith.addf %18, %21 : vector<32x64xf32>
    %c0_20 = arith.constant 0 : index
    %c0_21 = arith.constant 0 : index
    %23 = vector.load %arg31[%c0_20, %c0_21] : memref<32x64xf32, #tpu.memory_space<vmem>>, vector<32x64xf32>
    tpu.vector_store %arg31[%c0_20, %c0_21], %22 {strides = array<i32>} : memref<32x64xf32, #tpu.memory_space<vmem>>, vector<32x64xf32>,
    %c0_22 = arith.constant 0 : index
    %c0_23 = arith.constant 0 : index
    %24 = vector.load %arg14[%c0_22, %c0_23] : memref<1x64xf32, #tpu.memory_space<vmem>>, vector<1x64xf32>
    %cst_24 = arith.constant 9.900000e-01 : f32
    %25 = vector.broadcast %cst_24 : f32 to vector<1x64xf32>
    %26 = arith.mulf %24, %25 : vector<1x64xf32>
    %c0_25 = arith.constant 0 : index
    %c0_26 = arith.constant 0 : index
    %27 = vector.load %arg6[%c0_25, %c0_26] : memref<1x64xf32, #tpu.memory_space<vmem>>, vector<1x64xf32>
    %cst_27 = arith.constant 0.00999999977 : f32
    %28 = vector.broadcast %cst_27 : f32 to vector<1x64xf32>
    %29 = arith.mulf %28, %27 : vector<1x64xf32>
    %30 = arith.addf %26, %29 : vector<1x64xf32>
    %c0_28 = arith.constant 0 : index
    %c0_29 = arith.constant 0 : index
    %31 = vector.load %arg32[%c0_28, %c0_29] : memref<1x64xf32, #tpu.memory_space<vmem>>, vector<1x64xf32>
    tpu.vector_store %arg32[%c0_28, %c0_29], %30 {strides = array<i32>} : memref<1x64xf32, #tpu.memory_space<vmem>>, vector<1x64xf32>,
    %c0_30 = arith.constant 0 : index
    %c0_31 = arith.constant 0 : index
    %32 = vector.load %arg15[%c0_30, %c0_31] : memref<1x64xf32, #tpu.memory_space<vmem>>, vector<1x64xf32>
    %cst_32 = arith.constant 9.900000e-01 : f32
    %33 = vector.broadcast %cst_32 : f32 to vector<1x64xf32>
    %34 = arith.mulf %32, %33 : vector<1x64xf32>
    %c0_33 = arith.constant 0 : index
    %c0_34 = arith.constant 0 : index
    %35 = vector.load %arg7[%c0_33, %c0_34] : memref<1x64xf32, #tpu.memory_space<vmem>>, vector<1x64xf32>
    %cst_35 = arith.constant 0.00999999977 : f32
    %36 = vector.broadcast %cst_35 : f32 to vector<1x64xf32>
    %37 = arith.mulf %36, %35 : vector<1x64xf32>
    %38 = arith.addf %34, %37 : vector<1x64xf32>
    %c0_36 = arith.constant 0 : index
    %c0_37 = arith.constant 0 : index
    %39 = vector.load %arg33[%c0_36, %c0_37] : memref<1x64xf32, #tpu.memory_space<vmem>>, vector<1x64xf32>
    tpu.vector_store %arg33[%c0_36, %c0_37], %38 {strides = array<i32>} : memref<1x64xf32, #tpu.memory_space<vmem>>, vector<1x64xf32>,
    %c0_38 = arith.constant 0 : index
    %c0_39 = arith.constant 0 : index
    %40 = vector.load %arg16[%c0_38, %c0_39] : memref<1x64xf32, #tpu.memory_space<vmem>>, vector<1x64xf32>
    %cst_40 = arith.constant 9.900000e-01 : f32
    %41 = vector.broadcast %cst_40 : f32 to vector<1x64xf32>
    %42 = arith.mulf %40, %41 : vector<1x64xf32>
    %c0_41 = arith.constant 0 : index
    %c0_42 = arith.constant 0 : index
    %43 = vector.load %arg8[%c0_41, %c0_42] : memref<1x64xf32, #tpu.memory_space<vmem>>, vector<1x64xf32>
    %cst_43 = arith.constant 0.00999999977 : f32
    %44 = vector.broadcast %cst_43 : f32 to vector<1x64xf32>
    %45 = arith.mulf %44, %43 : vector<1x64xf32>
    %46 = arith.addf %42, %45 : vector<1x64xf32>
    %c0_44 = arith.constant 0 : index
    %c0_45 = arith.constant 0 : index
    %47 = vector.load %arg34[%c0_44, %c0_45] : memref<1x64xf32, #tpu.memory_space<vmem>>, vector<1x64xf32>
    tpu.vector_store %arg34[%c0_44, %c0_45], %46 {strides = array<i32>} : memref<1x64xf32, #tpu.memory_space<vmem>>, vector<1x64xf32>,
    %c0_46 = arith.constant 0 : index
    %c0_47 = arith.constant 0 : index
    %48 = vector.load %arg17[%c0_46, %c0_47] : memref<64x16xf32, #tpu.memory_space<vmem>>, vector<64x16xf32>
    %cst_48 = arith.constant 9.900000e-01 : f32
    %49 = vector.broadcast %cst_48 : f32 to vector<64x16xf32>
    %50 = arith.mulf %48, %49 : vector<64x16xf32>
    %c0_49 = arith.constant 0 : index
    %c0_50 = arith.constant 0 : index
    %51 = vector.load %arg9[%c0_49, %c0_50] : memref<64x16xf32, #tpu.memory_space<vmem>>, vector<64x16xf32>
    %cst_51 = arith.constant 0.00999999977 : f32
    %52 = vector.broadcast %cst_51 : f32 to vector<64x16xf32>
    %53 = arith.mulf %52, %51 : vector<64x16xf32>
    %54 = arith.addf %50, %53 : vector<64x16xf32>
    %c0_52 = arith.constant 0 : index
    %c0_53 = arith.constant 0 : index
    %55 = vector.load %arg35[%c0_52, %c0_53] : memref<64x16xf32, #tpu.memory_space<vmem>>, vector<64x16xf32>
    tpu.vector_store %arg35[%c0_52, %c0_53], %54 {strides = array<i32>} : memref<64x16xf32, #tpu.memory_space<vmem>>, vector<64x16xf32>,
    %c0_54 = arith.constant 0 : index
    %c0_55 = arith.constant 0 : index
    %56 = vector.load %arg18[%c0_54, %c0_55] : memref<1x16xf32, #tpu.memory_space<vmem>>, vector<1x16xf32>
    %cst_56 = arith.constant 9.900000e-01 : f32
    %57 = vector.broadcast %cst_56 : f32 to vector<1x16xf32>
    %58 = arith.mulf %56, %57 : vector<1x16xf32>
    %c0_57 = arith.constant 0 : index
    %c0_58 = arith.constant 0 : index
    %59 = vector.load %arg10[%c0_57, %c0_58] : memref<1x16xf32, #tpu.memory_space<vmem>>, vector<1x16xf32>
    %cst_59 = arith.constant 0.00999999977 : f32
    %60 = vector.broadcast %cst_59 : f32 to vector<1x16xf32>
    %61 = arith.mulf %60, %59 : vector<1x16xf32>
    %62 = arith.addf %58, %61 : vector<1x16xf32>
    %c0_60 = arith.constant 0 : index
    %c0_61 = arith.constant 0 : index
    %63 = vector.load %arg36[%c0_60, %c0_61] : memref<1x16xf32, #tpu.memory_space<vmem>>, vector<1x16xf32>
    tpu.vector_store %arg36[%c0_60, %c0_61], %62 {strides = array<i32>} : memref<1x16xf32, #tpu.memory_space<vmem>>, vector<1x16xf32>,
    %c0_62 = arith.constant 0 : index
    %c0_63 = arith.constant 0 : index
    %64 = vector.load %arg0[%c0_62, %c0_63] : memref<8x768xf32, #tpu.memory_space<vmem>>, vector<8x768xf32>
    %c0_64 = arith.constant 0 : index
    %c0_65 = arith.constant 0 : index
    %65 = vector.load %arg3[%c0_64, %c0_65] : memref<768x32xf32, #tpu.memory_space<vmem>>, vector<768x32xf32>
    %c0_66 = arith.constant 0 : index
    %c0_67 = arith.constant 0 : index
    %66 = vector.load %arg4[%c0_66, %c0_67] : memref<1x32xf32, #tpu.memory_space<vmem>>, vector<1x32xf32>
    %cst_68 = arith.constant dense<0.000000e+00> : vector<8x32xf32>
    %67 = tpu.matmul %64, %65, %cst_68 {dimension_numbers = #tpu.dot_dimension_numbers<[1], [0], [0], [1], [0, 0, 1, 1], [], []>} : vector<8x768xf32>, vector<768x32xf32>, vector<8x32xf32> -> vector<8x32xf32>
    %68 = vector.broadcast %66 : vector<1x32xf32> to vector<8x32xf32>
    %69 = arith.addf %67, %68 : vector<8x32xf32>
    %cst_69 = arith.constant 0.000000e+00 : f32
    %70 = vector.broadcast %cst_69 : f32 to vector<8x32xf32>
    %71 = arith.maximumf %69, %70 : vector<8x32xf32>
    %c0_70 = arith.constant 0 : index
    %c0_71 = arith.constant 0 : index
    %72 = vector.load %arg5[%c0_70, %c0_71] : memref<32x64xf32, #tpu.memory_space<vmem>>, vector<32x64xf32>
    %c0_72 = arith.constant 0 : index
    %c0_73 = arith.constant 0 : index
    %73 = vector.load %arg6[%c0_72, %c0_73] : memref<1x64xf32, #tpu.memory_space<vmem>>, vector<1x64xf32>
    %c0_74 = arith.constant 0 : index
    %c0_75 = arith.constant 0 : index
    %74 = vector.load %arg7[%c0_74, %c0_75] : memref<1x64xf32, #tpu.memory_space<vmem>>, vector<1x64xf32>
    %c0_76 = arith.constant 0 : index
    %c0_77 = arith.constant 0 : index
    %75 = vector.load %arg8[%c0_76, %c0_77] : memref<1x64xf32, #tpu.memory_space<vmem>>, vector<1x64xf32>
    %c0_78 = arith.constant 0 : index
    %c0_79 = arith.constant 0 : index
    %76 = vector.load %arg9[%c0_78, %c0_79] : memref<64x16xf32, #tpu.memory_space<vmem>>, vector<64x16xf32>
    %c0_80 = arith.constant 0 : index
    %c0_81 = arith.constant 0 : index
    %77 = vector.load %arg10[%c0_80, %c0_81] : memref<1x16xf32, #tpu.memory_space<vmem>>, vector<1x16xf32>
    %cst_82 = arith.constant dense<0.000000e+00> : vector<8x64xf32>
    %78 = tpu.matmul %71, %72, %cst_82 {dimension_numbers = #tpu.dot_dimension_numbers<[1], [0], [0], [1], [0, 0, 1, 1], [], []>} : vector<8x32xf32>, vector<32x64xf32>, vector<8x64xf32> -> vector<8x64xf32>
    %79 = vector.broadcast %73 : vector<1x64xf32> to vector<8x64xf32>
    %80 = arith.addf %78, %79 : vector<8x64xf32>
    %cst_83 = arith.constant dense<0.000000e+00> : vector<64xf32>
    %81 = vector.multi_reduction <add>, %80, %cst_83 [0] : vector<8x64xf32> to vector<64xf32>
    %82 = vector.shape_cast %81 : vector<64xf32> to vector<1x64xf32>
    %cst_84 = arith.constant 8.000000e+00 : f32
    %83 = vector.broadcast %cst_84 : f32 to vector<1x64xf32>
    %84 = arith.divf %82, %83 : vector<1x64xf32>
    %85 = vector.broadcast %84 : vector<1x64xf32> to vector<8x64xf32>
    %86 = arith.subf %80, %85 : vector<8x64xf32>
    %87 = arith.mulf %86, %86 : vector<8x64xf32>
    %cst_85 = arith.constant dense<0.000000e+00> : vector<64xf32>
    %88 = vector.multi_reduction <add>, %87, %cst_85 [0] : vector<8x64xf32> to vector<64xf32>
    %89 = vector.shape_cast %88 : vector<64xf32> to vector<1x64xf32>
    %cst_86 = arith.constant 8.000000e+00 : f32
    %90 = vector.broadcast %cst_86 : f32 to vector<1x64xf32>
    %91 = arith.divf %89, %90 : vector<1x64xf32>
    %cst_87 = arith.constant 9.99999974E-6 : f32
    %92 = vector.broadcast %cst_87 : f32 to vector<1x64xf32>
    %93 = arith.addf %91, %92 : vector<1x64xf32>
    %94 = math.rsqrt %93 : vector<1x64xf32>
    %95 = vector.broadcast %94 : vector<1x64xf32> to vector<8x64xf32>
    %96 = arith.mulf %86, %95 : vector<8x64xf32>
    %97 = vector.broadcast %74 : vector<1x64xf32> to vector<8x64xf32>
    %98 = arith.mulf %96, %97 : vector<8x64xf32>
    %99 = vector.broadcast %75 : vector<1x64xf32> to vector<8x64xf32>
    %100 = arith.addf %98, %99 : vector<8x64xf32>
    %cst_88 = arith.constant 0.000000e+00 : f32
    %101 = vector.broadcast %cst_88 : f32 to vector<8x64xf32>
    %102 = arith.maximumf %100, %101 : vector<8x64xf32>
    %cst_89 = arith.constant dense<0.000000e+00> : vector<8x16xf32>
    %103 = tpu.matmul %102, %76, %cst_89 {dimension_numbers = #tpu.dot_dimension_numbers<[1], [0], [0], [1], [0, 0, 1, 1], [], []>} : vector<8x64xf32>, vector<64x16xf32>, vector<8x16xf32> -> vector<8x16xf32>
    %104 = vector.broadcast %77 : vector<1x16xf32> to vector<8x16xf32>
    %105 = arith.addf %103, %104 : vector<8x16xf32>
    %c0_90 = arith.constant 0 : index
    %c0_91 = arith.constant 0 : index
    %106 = vector.load %arg19[%c0_90, %c0_91] : memref<16x64xf32, #tpu.memory_space<vmem>>, vector<16x64xf32>
    %c0_92 = arith.constant 0 : index
    %c0_93 = arith.constant 0 : index
    %107 = vector.load %arg20[%c0_92, %c0_93] : memref<1x64xf32, #tpu.memory_space<vmem>>, vector<1x64xf32>
    %c0_94 = arith.constant 0 : index
    %c0_95 = arith.constant 0 : index
    %108 = vector.load %arg21[%c0_94, %c0_95] : memref<1x64xf32, #tpu.memory_space<vmem>>, vector<1x64xf32>
    %c0_96 = arith.constant 0 : index
    %c0_97 = arith.constant 0 : index
    %109 = vector.load %arg22[%c0_96, %c0_97] : memref<1x64xf32, #tpu.memory_space<vmem>>, vector<1x64xf32>
    %c0_98 = arith.constant 0 : index
    %c0_99 = arith.constant 0 : index
    %110 = vector.load %arg23[%c0_98, %c0_99] : memref<64x16xf32, #tpu.memory_space<vmem>>, vector<64x16xf32>
    %c0_100 = arith.constant 0 : index
    %c0_101 = arith.constant 0 : index
    %111 = vector.load %arg24[%c0_100, %c0_101] : memref<1x16xf32, #tpu.memory_space<vmem>>, vector<1x16xf32>
    %cst_102 = arith.constant dense<0.000000e+00> : vector<8x64xf32>
    %112 = tpu.matmul %105, %106, %cst_102 {dimension_numbers = #tpu.dot_dimension_numbers<[1], [0], [0], [1], [0, 0, 1, 1], [], []>} : vector<8x16xf32>, vector<16x64xf32>, vector<8x64xf32> -> vector<8x64xf32>
    %113 = vector.broadcast %107 : vector<1x64xf32> to vector<8x64xf32>
    %114 = arith.addf %112, %113 : vector<8x64xf32>
    %cst_103 = arith.constant dense<0.000000e+00> : vector<64xf32>
    %115 = vector.multi_reduction <add>, %114, %cst_103 [0] : vector<8x64xf32> to vector<64xf32>
    %116 = vector.shape_cast %115 : vector<64xf32> to vector<1x64xf32>
    %cst_104 = arith.constant 8.000000e+00 : f32
    %117 = vector.broadcast %cst_104 : f32 to vector<1x64xf32>
    %118 = arith.divf %116, %117 : vector<1x64xf32>
    %119 = vector.broadcast %118 : vector<1x64xf32> to vector<8x64xf32>
    %120 = arith.subf %114, %119 : vector<8x64xf32>
    %121 = arith.mulf %120, %120 : vector<8x64xf32>
    %cst_105 = arith.constant dense<0.000000e+00> : vector<64xf32>
    %122 = vector.multi_reduction <add>, %121, %cst_105 [0] : vector<8x64xf32> to vector<64xf32>
    %123 = vector.shape_cast %122 : vector<64xf32> to vector<1x64xf32>
    %cst_106 = arith.constant 8.000000e+00 : f32
    %124 = vector.broadcast %cst_106 : f32 to vector<1x64xf32>
    %125 = arith.divf %123, %124 : vector<1x64xf32>
    %cst_107 = arith.constant 9.99999974E-6 : f32
    %126 = vector.broadcast %cst_107 : f32 to vector<1x64xf32>
    %127 = arith.addf %125, %126 : vector<1x64xf32>
    %128 = math.rsqrt %127 : vector<1x64xf32>
    %129 = vector.broadcast %128 : vector<1x64xf32> to vector<8x64xf32>
    %130 = arith.mulf %120, %129 : vector<8x64xf32>
    %131 = vector.broadcast %108 : vector<1x64xf32> to vector<8x64xf32>
    %132 = arith.mulf %130, %131 : vector<8x64xf32>
    %133 = vector.broadcast %109 : vector<1x64xf32> to vector<8x64xf32>
    %134 = arith.addf %132, %133 : vector<8x64xf32>
    %cst_108 = arith.constant 0.000000e+00 : f32
    %135 = vector.broadcast %cst_108 : f32 to vector<8x64xf32>
    %136 = arith.maximumf %134, %135 : vector<8x64xf32>
    %cst_109 = arith.constant dense<0.000000e+00> : vector<8x16xf32>
    %137 = tpu.matmul %136, %110, %cst_109 {dimension_numbers = #tpu.dot_dimension_numbers<[1], [0], [0], [1], [0, 0, 1, 1], [], []>} : vector<8x64xf32>, vector<64x16xf32>, vector<8x16xf32> -> vector<8x16xf32>
    %138 = vector.broadcast %111 : vector<1x16xf32> to vector<8x16xf32>
    %139 = arith.addf %137, %138 : vector<8x16xf32>
    %140 = arith.mulf %139, %139 : vector<8x16xf32>
    %cst_110 = arith.constant dense<0.000000e+00> : vector<8xf32>
    %141 = vector.multi_reduction <add>, %140, %cst_110 [1] : vector<8x16xf32> to vector<8xf32>
    %142 = vector.shape_cast %141 : vector<8xf32> to vector<8x1xf32>
    %cst_111 = arith.constant 1.000000e-24 : f32
    %143 = vector.broadcast %cst_111 : f32 to vector<8x1xf32>
    %144 = arith.maximumf %142, %143 : vector<8x1xf32>
    %145 = math.rsqrt %144 : vector<8x1xf32>
    %146 = vector.broadcast %145 : vector<8x1xf32> to vector<8x16xf32>
    %147 = arith.mulf %139, %146 : vector<8x16xf32>
    %c0_112 = arith.constant 0 : index
    %c0_113 = arith.constant 0 : index
    %148 = vector.load %arg1[%c0_112, %c0_113] : memref<8x768xf32, #tpu.memory_space<vmem>>, vector<8x768xf32>
    %cst_114 = arith.constant dense<0.000000e+00> : vector<8x32xf32>
    %149 = tpu.matmul %148, %6, %cst_114 {dimension_numbers = #tpu.dot_dimension_numbers<[1], [0], [0], [1], [0, 0, 1, 1], [], []>} : vector<8x768xf32>, vector<768x32xf32>, vector<8x32xf32> -> vector<8x32xf32>
    %150 = vector.broadcast %14 : vector<1x32xf32> to vector<8x32xf32>
    %151 = arith.addf %149, %150 : vector<8x32xf32>
    %cst_115 = arith.constant 0.000000e+00 : f32
    %152 = vector.broadcast %cst_115 : f32 to vector<8x32xf32>
    %153 = arith.maximumf %151, %152 : vector<8x32xf32>
    %cst_116 = arith.constant dense<0.000000e+00> : vector<8x64xf32>
    %154 = tpu.matmul %153, %22, %cst_116 {dimension_numbers = #tpu.dot_dimension_numbers<[1], [0], [0], [1], [0, 0, 1, 1], [], []>} : vector<8x32xf32>, vector<32x64xf32>, vector<8x64xf32> -> vector<8x64xf32>
    %155 = vector.broadcast %30 : vector<1x64xf32> to vector<8x64xf32>
    %156 = arith.addf %154, %155 : vector<8x64xf32>
    %cst_117 = arith.constant dense<0.000000e+00> : vector<64xf32>
    %157 = vector.multi_reduction <add>, %156, %cst_117 [0] : vector<8x64xf32> to vector<64xf32>
    %158 = vector.shape_cast %157 : vector<64xf32> to vector<1x64xf32>
    %cst_118 = arith.constant 8.000000e+00 : f32
    %159 = vector.broadcast %cst_118 : f32 to vector<1x64xf32>
    %160 = arith.divf %158, %159 : vector<1x64xf32>
    %161 = vector.broadcast %160 : vector<1x64xf32> to vector<8x64xf32>
    %162 = arith.subf %156, %161 : vector<8x64xf32>
    %163 = arith.mulf %162, %162 : vector<8x64xf32>
    %cst_119 = arith.constant dense<0.000000e+00> : vector<64xf32>
    %164 = vector.multi_reduction <add>, %163, %cst_119 [0] : vector<8x64xf32> to vector<64xf32>
    %165 = vector.shape_cast %164 : vector<64xf32> to vector<1x64xf32>
    %cst_120 = arith.constant 8.000000e+00 : f32
    %166 = vector.broadcast %cst_120 : f32 to vector<1x64xf32>
    %167 = arith.divf %165, %166 : vector<1x64xf32>
    %cst_121 = arith.constant 9.99999974E-6 : f32
    %168 = vector.broadcast %cst_121 : f32 to vector<1x64xf32>
    %169 = arith.addf %167, %168 : vector<1x64xf32>
    %170 = math.rsqrt %169 : vector<1x64xf32>
    %171 = vector.broadcast %170 : vector<1x64xf32> to vector<8x64xf32>
    %172 = arith.mulf %162, %171 : vector<8x64xf32>
    %173 = vector.broadcast %38 : vector<1x64xf32> to vector<8x64xf32>
    %174 = arith.mulf %172, %173 : vector<8x64xf32>
    %175 = vector.broadcast %46 : vector<1x64xf32> to vector<8x64xf32>
    %176 = arith.addf %174, %175 : vector<8x64xf32>
    %cst_122 = arith.constant 0.000000e+00 : f32
    %177 = vector.broadcast %cst_122 : f32 to vector<8x64xf32>
    %178 = arith.maximumf %176, %177 : vector<8x64xf32>
    %cst_123 = arith.constant dense<0.000000e+00> : vector<8x16xf32>
    %179 = tpu.matmul %178, %54, %cst_123 {dimension_numbers = #tpu.dot_dimension_numbers<[1], [0], [0], [1], [0, 0, 1, 1], [], []>} : vector<8x64xf32>, vector<64x16xf32>, vector<8x16xf32> -> vector<8x16xf32>
    %180 = vector.broadcast %62 : vector<1x16xf32> to vector<8x16xf32>
    %181 = arith.addf %179, %180 : vector<8x16xf32>
    %c0_124 = arith.constant 0 : index
    %c0_125 = arith.constant 0 : index
    %182 = vector.load %arg2[%c0_124, %c0_125] : memref<8x8xf32, #tpu.memory_space<vmem>>, vector<8x8xf32>
    %183 = arith.mulf %181, %181 : vector<8x16xf32>
    %cst_126 = arith.constant dense<0.000000e+00> : vector<8xf32>
    %184 = vector.multi_reduction <add>, %183, %cst_126 [1] : vector<8x16xf32> to vector<8xf32>
    %185 = vector.shape_cast %184 : vector<8xf32> to vector<8x1xf32>
    %cst_127 = arith.constant 1.000000e-24 : f32
    %186 = vector.broadcast %cst_127 : f32 to vector<8x1xf32>
    %187 = arith.maximumf %185, %186 : vector<8x1xf32>
    %188 = math.rsqrt %187 : vector<8x1xf32>
    %189 = vector.broadcast %188 : vector<8x1xf32> to vector<8x16xf32>
    %190 = arith.mulf %181, %189 : vector<8x16xf32>
    %cst_128 = arith.constant dense<0.000000e+00> : vector<8x16xf32>
    %191 = tpu.matmul %182, %190, %cst_128 {dimension_numbers = #tpu.dot_dimension_numbers<[1], [0], [0], [1], [0, 0, 1, 1], [], []>} : vector<8x8xf32>, vector<8x16xf32>, vector<8x16xf32> -> vector<8x16xf32>
    %c0_129 = arith.constant 0 : index
    %192 = memref.load %arg26[%c0_129] : memref<1xi32, #tpu.memory_space<smem>>
    %193 = tpu.assume_multiple %192, 8 : i32
    %c0_130 = arith.constant 0 : index
    %c0_131 = arith.constant 0 : index
    %194 = vector.load %arg25[%c0_130, %c0_131] : memref<64x16xf32, #tpu.memory_space<vmem>>, vector<64x16xf32>
    %c0_132 = arith.constant 0 : index
    %c0_133 = arith.constant 0 : index
    %195 = vector.load %arg28[%c0_132, %c0_133] : memref<64x16xf32, #tpu.memory_space<vmem>>, vector<64x16xf32>
    tpu.vector_store %arg28[%c0_132, %c0_133], %194 {strides = array<i32>} : memref<64x16xf32, #tpu.memory_space<vmem>>, vector<64x16xf32>,
    %196 = arith.index_cast %193 : i32 to index
    %c0_134 = arith.constant 0 : index
    %197 = vector.load %arg28[%196, %c0_134] : memref<64x16xf32, #tpu.memory_space<vmem>>, vector<8x16xf32>
    tpu.vector_store %arg28[%196, %c0_134], %191 {strides = array<i32>} : memref<64x16xf32, #tpu.memory_space<vmem>>, vector<8x16xf32>,
    %c0_135 = arith.constant 0 : index
    %c0_136 = arith.constant 0 : index
    %198 = vector.load %arg28[%c0_135, %c0_136] : memref<64x16xf32, #tpu.memory_space<vmem>>, vector<64x16xf32>
    %cst_137 = arith.constant dense<0.000000e+00> : vector<8x64xf32>
    %199 = tpu.matmul %191, %198, %cst_137 {dimension_numbers = #tpu.dot_dimension_numbers<[1], [1], [0], [0], [0, 0, 1, 0], [], []>} : vector<8x16xf32>, vector<64x16xf32>, vector<8x64xf32> -> vector<8x64xf32>
    %cst_138 = arith.constant 2.000000e+00 : f32
    %200 = vector.broadcast %cst_138 : f32 to vector<8x64xf32>
    %201 = arith.mulf %200, %199 : vector<8x64xf32>
    %cst_139 = arith.constant 2.000000e+00 : f32
    %202 = vector.broadcast %cst_139 : f32 to vector<8x64xf32>
    %203 = arith.subf %202, %201 : vector<8x64xf32>
    %cst_140 = arith.constant dense<0.000000e+00> : vector<8x64xf32>
    %204 = tpu.matmul %147, %198, %cst_140 {dimension_numbers = #tpu.dot_dimension_numbers<[1], [1], [0], [0], [0, 0, 1, 0], [], []>} : vector<8x16xf32>, vector<64x16xf32>, vector<8x64xf32> -> vector<8x64xf32>
    %cst_141 = arith.constant 2.000000e+00 : f32
    %205 = vector.broadcast %cst_141 : f32 to vector<8x64xf32>
    %206 = arith.mulf %205, %204 : vector<8x64xf32>
    %cst_142 = arith.constant 2.000000e+00 : f32
    %207 = vector.broadcast %cst_142 : f32 to vector<8x64xf32>
    %208 = arith.subf %207, %206 : vector<8x64xf32>
    %209 = tpu.iota {dimensions = array<i32: 1>} : vector<8x64xi32>
    %cst_143 = arith.constant 0.000000e+00 : f32
    %210 = vector.broadcast %cst_143 : f32 to vector<8x1xf32>
    %cst_144 = arith.constant dense<0x7F800000> : vector<8xf32>
    %211 = vector.multi_reduction <minimumf>, %203, %cst_144 [1] : vector<8x64xf32> to vector<8xf32>
    %212 = vector.shape_cast %211 : vector<8xf32> to vector<8x1xf32>
    %213 = vector.broadcast %212 : vector<8x1xf32> to vector<8x64xf32>
    %214 = arith.cmpf oeq, %203, %213 : vector<8x64xf32>
    %c64_i32 = arith.constant 64 : i32
    %215 = vector.broadcast %c64_i32 : i32 to vector<8x64xi32>
    %216 = arith.select %214, %209, %215 : vector<8x64xi1>, vector<8x64xi32>
    %cst_145 = arith.constant dense<2147483647> : vector<8xi32>
    %217 = vector.multi_reduction <minsi>, %216, %cst_145 [1] : vector<8x64xi32> to vector<8xi32>
    %218 = vector.shape_cast %217 : vector<8xi32> to vector<8x1xi32>
    %219 = vector.broadcast %218 : vector<8x1xi32> to vector<8x64xi32>
    %220 = arith.cmpi eq, %209, %219 : vector<8x64xi32>
    %cst_146 = arith.constant 0.000000e+00 : f32
    %221 = vector.broadcast %cst_146 : f32 to vector<8x64xf32>
    %222 = arith.select %220, %208, %221 : vector<8x64xi1>, vector<8x64xf32>
    %cst_147 = arith.constant dense<0.000000e+00> : vector<8xf32>
    %223 = vector.multi_reduction <add>, %222, %cst_147 [1] : vector<8x64xf32> to vector<8xf32>
    %224 = vector.shape_cast %223 : vector<8xf32> to vector<8x1xf32>
    %225 = arith.addf %210, %224 : vector<8x1xf32>
    %cst_148 = arith.constant 1.000000e+30 : f32
    %226 = vector.broadcast %cst_148 : f32 to vector<8x64xf32>
    %227 = arith.select %220, %226, %203 : vector<8x64xi1>, vector<8x64xf32>
    %cst_149 = arith.constant dense<0x7F800000> : vector<8xf32>
    %228 = vector.multi_reduction <minimumf>, %227, %cst_149 [1] : vector<8x64xf32> to vector<8xf32>
    %229 = vector.shape_cast %228 : vector<8xf32> to vector<8x1xf32>
    %230 = vector.broadcast %229 : vector<8x1xf32> to vector<8x64xf32>
    %231 = arith.cmpf oeq, %227, %230 : vector<8x64xf32>
    %c64_i32_150 = arith.constant 64 : i32
    %232 = vector.broadcast %c64_i32_150 : i32 to vector<8x64xi32>
    %233 = arith.select %231, %209, %232 : vector<8x64xi1>, vector<8x64xi32>
    %cst_151 = arith.constant dense<2147483647> : vector<8xi32>
    %234 = vector.multi_reduction <minsi>, %233, %cst_151 [1] : vector<8x64xi32> to vector<8xi32>
    %235 = vector.shape_cast %234 : vector<8xi32> to vector<8x1xi32>
    %236 = vector.broadcast %235 : vector<8x1xi32> to vector<8x64xi32>
    %237 = arith.cmpi eq, %209, %236 : vector<8x64xi32>
    %cst_152 = arith.constant 0.000000e+00 : f32
    %238 = vector.broadcast %cst_152 : f32 to vector<8x64xf32>
    %239 = arith.select %237, %208, %238 : vector<8x64xi1>, vector<8x64xf32>
    %cst_153 = arith.constant dense<0.000000e+00> : vector<8xf32>
    %240 = vector.multi_reduction <add>, %239, %cst_153 [1] : vector<8x64xf32> to vector<8xf32>
    %241 = vector.shape_cast %240 : vector<8xf32> to vector<8x1xf32>
    %242 = arith.addf %225, %241 : vector<8x1xf32>
    %cst_154 = arith.constant 1.000000e+30 : f32
    %243 = vector.broadcast %cst_154 : f32 to vector<8x64xf32>
    %244 = arith.select %237, %243, %227 : vector<8x64xi1>, vector<8x64xf32>
    %cst_155 = arith.constant dense<0x7F800000> : vector<8xf32>
    %245 = vector.multi_reduction <minimumf>, %244, %cst_155 [1] : vector<8x64xf32> to vector<8xf32>
    %246 = vector.shape_cast %245 : vector<8xf32> to vector<8x1xf32>
    %247 = vector.broadcast %246 : vector<8x1xf32> to vector<8x64xf32>
    %248 = arith.cmpf oeq, %244, %247 : vector<8x64xf32>
    %c64_i32_156 = arith.constant 64 : i32
    %249 = vector.broadcast %c64_i32_156 : i32 to vector<8x64xi32>
    %250 = arith.select %248, %209, %249 : vector<8x64xi1>, vector<8x64xi32>
    %cst_157 = arith.constant dense<2147483647> : vector<8xi32>
    %251 = vector.multi_reduction <minsi>, %250, %cst_157 [1] : vector<8x64xi32> to vector<8xi32>
    %252 = vector.shape_cast %251 : vector<8xi32> to vector<8x1xi32>
    %253 = vector.broadcast %252 : vector<8x1xi32> to vector<8x64xi32>
    %254 = arith.cmpi eq, %209, %253 : vector<8x64xi32>
    %cst_158 = arith.constant 0.000000e+00 : f32
    %255 = vector.broadcast %cst_158 : f32 to vector<8x64xf32>
    %256 = arith.select %254, %208, %255 : vector<8x64xi1>, vector<8x64xf32>
    %cst_159 = arith.constant dense<0.000000e+00> : vector<8xf32>
    %257 = vector.multi_reduction <add>, %256, %cst_159 [1] : vector<8x64xf32> to vector<8xf32>
    %258 = vector.shape_cast %257 : vector<8xf32> to vector<8x1xf32>
    %259 = arith.addf %242, %258 : vector<8x1xf32>
    %cst_160 = arith.constant 1.000000e+30 : f32
    %260 = vector.broadcast %cst_160 : f32 to vector<8x64xf32>
    %261 = arith.select %254, %260, %244 : vector<8x64xi1>, vector<8x64xf32>
    %cst_161 = arith.constant dense<0x7F800000> : vector<8xf32>
    %262 = vector.multi_reduction <minimumf>, %261, %cst_161 [1] : vector<8x64xf32> to vector<8xf32>
    %263 = vector.shape_cast %262 : vector<8xf32> to vector<8x1xf32>
    %264 = vector.broadcast %263 : vector<8x1xf32> to vector<8x64xf32>
    %265 = arith.cmpf oeq, %261, %264 : vector<8x64xf32>
    %c64_i32_162 = arith.constant 64 : i32
    %266 = vector.broadcast %c64_i32_162 : i32 to vector<8x64xi32>
    %267 = arith.select %265, %209, %266 : vector<8x64xi1>, vector<8x64xi32>
    %cst_163 = arith.constant dense<2147483647> : vector<8xi32>
    %268 = vector.multi_reduction <minsi>, %267, %cst_163 [1] : vector<8x64xi32> to vector<8xi32>
    %269 = vector.shape_cast %268 : vector<8xi32> to vector<8x1xi32>
    %270 = vector.broadcast %269 : vector<8x1xi32> to vector<8x64xi32>
    %271 = arith.cmpi eq, %209, %270 : vector<8x64xi32>
    %cst_164 = arith.constant 0.000000e+00 : f32
    %272 = vector.broadcast %cst_164 : f32 to vector<8x64xf32>
    %273 = arith.select %271, %208, %272 : vector<8x64xi1>, vector<8x64xf32>
    %cst_165 = arith.constant dense<0.000000e+00> : vector<8xf32>
    %274 = vector.multi_reduction <add>, %273, %cst_165 [1] : vector<8x64xf32> to vector<8xf32>
    %275 = vector.shape_cast %274 : vector<8xf32> to vector<8x1xf32>
    %276 = arith.addf %259, %275 : vector<8x1xf32>
    %cst_166 = arith.constant 1.000000e+30 : f32
    %277 = vector.broadcast %cst_166 : f32 to vector<8x64xf32>
    %278 = arith.select %271, %277, %261 : vector<8x64xi1>, vector<8x64xf32>
    %cst_167 = arith.constant dense<0x7F800000> : vector<8xf32>
    %279 = vector.multi_reduction <minimumf>, %278, %cst_167 [1] : vector<8x64xf32> to vector<8xf32>
    %280 = vector.shape_cast %279 : vector<8xf32> to vector<8x1xf32>
    %281 = vector.broadcast %280 : vector<8x1xf32> to vector<8x64xf32>
    %282 = arith.cmpf oeq, %278, %281 : vector<8x64xf32>
    %c64_i32_168 = arith.constant 64 : i32
    %283 = vector.broadcast %c64_i32_168 : i32 to vector<8x64xi32>
    %284 = arith.select %282, %209, %283 : vector<8x64xi1>, vector<8x64xi32>
    %cst_169 = arith.constant dense<2147483647> : vector<8xi32>
    %285 = vector.multi_reduction <minsi>, %284, %cst_169 [1] : vector<8x64xi32> to vector<8xi32>
    %286 = vector.shape_cast %285 : vector<8xi32> to vector<8x1xi32>
    %287 = vector.broadcast %286 : vector<8x1xi32> to vector<8x64xi32>
    %288 = arith.cmpi eq, %209, %287 : vector<8x64xi32>
    %cst_170 = arith.constant 0.000000e+00 : f32
    %289 = vector.broadcast %cst_170 : f32 to vector<8x64xf32>
    %290 = arith.select %288, %208, %289 : vector<8x64xi1>, vector<8x64xf32>
    %cst_171 = arith.constant dense<0.000000e+00> : vector<8xf32>
    %291 = vector.multi_reduction <add>, %290, %cst_171 [1] : vector<8x64xf32> to vector<8xf32>
    %292 = vector.shape_cast %291 : vector<8xf32> to vector<8x1xf32>
    %293 = arith.addf %276, %292 : vector<8x1xf32>
    %294 = vector.shape_cast %293 : vector<8x1xf32> to vector<1x8x1xf32>
    %cst_172 = arith.constant dense<0.000000e+00> : vector<1xf32>
    %295 = vector.multi_reduction <add>, %294, %cst_172 [1, 2] : vector<1x8x1xf32> to vector<1xf32>
    %296 = vector.shape_cast %295 : vector<1xf32> to vector<1x1x1xf32>
    %297 = vector.extract %296[0, 0, 0] : f32 from vector<1x1x1xf32>
    %298 = vector.broadcast %297 : f32 to vector<1x1xf32>
    %cst_173 = arith.constant 4.000000e+01 : f32
    %299 = vector.broadcast %cst_173 : f32 to vector<1x1xf32>
    %300 = arith.divf %298, %299 : vector<1x1xf32>
    %c0_174 = arith.constant 0 : index
    %c0_175 = arith.constant 0 : index
    %301 = vector.load %arg27[%c0_174, %c0_175] : memref<1x1xf32, #tpu.memory_space<vmem>>, vector<1x1xf32>
    tpu.vector_store %arg27[%c0_174, %c0_175], %300 {strides = array<i32>} : memref<1x1xf32, #tpu.memory_space<vmem>>, vector<1x1xf32>,
    return
  }
}

</mosaic_0001>

<llo_original>
// kernel: mean_shift_forward.1
$region0: #{mean_shift_forward.1}
  #allocation0 [shape = 'u32[]', space=smem, size = 0x4, offset = 0x4, fixed_abs, tag = 'smem constant byte address 0x4 - core index']
  #allocation1 [shape = 'u32[72,128]{1,0:T(1,128)}', space=vmem, size = 0x9000, scoped, tag = 'internal scratch']
  #allocation2 [shape = 's32[1]{0:T(128)S(6)}', space=smem, size = 0x200, scoped, tag = 'scoped memory for mean_shift_forward.1']
  %s0 = inlined_call_operand.smem [shape: u32[37], index: -1, kind: input, shape index: {}]
  %s1 = sld [smem:[%s0]]
  %s2 = scalar_lea.smem %s0, 1
  %s3 = sld [smem:[%s2]]
  %s4 = scalar_lea.smem %s0, 2
  %s5 = sld [smem:[%s4]]
  %s6 = scalar_lea.smem %s0, 3
  %s7 = sld [smem:[%s6]]
  %s8 = scalar_lea.smem %s0, 4
  %s9 = sld [smem:[%s8]]
  %s10 = scalar_lea.smem %s0, 5
  %s11 = sld [smem:[%s10]]
  %s12 = scalar_lea.smem %s0, 6
  %s13 = sld [smem:[%s12]]
  %s14 = scalar_lea.smem %s0, 7
  %s15 = sld [smem:[%s14]]
  %s16 = scalar_lea.smem %s0, 8
  %s17 = sld [smem:[%s16]]
  %s18 = scalar_lea.smem %s0, 9
  %s19 = sld [smem:[%s18]]
  %s20 = scalar_lea.smem %s0, 10
  %s21 = sld [smem:[%s20]]
  %s22 = scalar_lea.smem %s0, 11
  %s23 = sld [smem:[%s22]]
  %s24 = scalar_lea.smem %s0, 12
  %s25 = sld [smem:[%s24]]
  %s26 = scalar_lea.smem %s0, 13
  %s27 = sld [smem:[%s26]]
  %s28 = scalar_lea.smem %s0, 14
  %s29 = sld [smem:[%s28]]
  %s30 = scalar_lea.smem %s0, 15
  %s31 = sld [smem:[%s30]]
  %s32 = scalar_lea.smem %s0, 16
  %s33 = sld [smem:[%s32]]
  %s34 = scalar_lea.smem %s0, 17
  %s35 = sld [smem:[%s34]]
  %s36 = scalar_lea.smem %s0, 18
  %s37 = sld [smem:[%s36]]
  %s38 = scalar_lea.smem %s0, 19
  %s39 = sld [smem:[%s38]]
  %s40 = scalar_lea.smem %s0, 20
  %s41 = sld [smem:[%s40]]
  %s42 = scalar_lea.smem %s0, 21
  %s43 = sld [smem:[%s42]]
  %s44 = scalar_lea.smem %s0, 22
  %s45 = sld [smem:[%s44]]
  %s46 = scalar_lea.smem %s0, 23
  %s47 = sld [smem:[%s46]]
  %s48 = scalar_lea.smem %s0, 24
  %s49 = sld [smem:[%s48]]
  %s50 = scalar_lea.smem %s0, 25
  %s51 = sld [smem:[%s50]]
  %s52 = scalar_lea.smem %s0, 26
  %s53 = sld [smem:[%s52]]
  %s54 = scalar_lea.smem %s0, 27
  %s55 = sld [smem:[%s54]]
  %s56 = scalar_lea.smem %s0, 28
  %s57 = sld [smem:[%s56]]
  %s58 = scalar_lea.smem %s0, 29
  %s59 = sld [smem:[%s58]]
  %s60 = scalar_lea.smem %s0, 30
  %s61 = sld [smem:[%s60]]
  %s62 = scalar_lea.smem %s0, 31
  %s63 = sld [smem:[%s62]]
  %s64 = scalar_lea.smem %s0, 32
  %s65 = sld [smem:[%s64]]
  %s66 = scalar_lea.smem %s0, 33
  %s67 = sld [smem:[%s66]]
  %s68 = scalar_lea.smem %s0, 34
  %s69 = sld [smem:[%s68]]
  %s70 = scalar_lea.smem %s0, 35
  %s71 = sld [smem:[%s70]]
  %s72 = scalar_lea.smem %s0, 36
  %s73 = sld [smem:[%s72]]
  %74 = xla_tuple %s55, %s57, %s59, %s61, %s63, %s65, %s67, %s69, %s71, %s73
  %s75 = sld [smem:[#allocation0]]
  $region190: #{mean_shift_forward.1} parent=0
    _
  %s77 = ssub.s32 1, %s75
  %s78 = scalar_select 0, %s77, %s75
  %79 = sst [smem:[#allocation2]] %s53
  $region1: #{mean_shift_forward.1} parent=0
    #allocation3 [shape = 'u8[512]{0}', space=vmem, size = 0x400, scoped, tag = 'output window, operand 0, single buffered']
    #allocation4 [shape = 's32[1]{0}', space=sflag, size = 0x4, scoped, tag = 'scoped memory for mean_shift_forward.1']
    %80 = vsyncpa [#allocation4], 0
    // Predicated region
    $region2: #{mean_shift_forward.1} parent=1 // pred_check
      _
    $region3: #{mean_shift_forward.1} parent=1 // pred_check_branch
      %82 = sbr.rel (0) target = $region5
    $region4: #{mean_shift_forward.1} parent=1 // pred_region
      _
    $region5: #{mean_shift_forward.1} parent=1 // pred_fallthru
      _
    // Predicated region
    $region6: #{mean_shift_forward.1} parent=1 // pred_check
      _
    $region7: #{mean_shift_forward.1} parent=1 // pred_check_branch
      %84 = sbr.rel (0) target = $region9
    $region8: #{mean_shift_forward.1} parent=1 // pred_region
      _
    $region9: #{mean_shift_forward.1} parent=1 // pred_fallthru
      _
    // Predicated region
    $region10: #{mean_shift_forward.1} parent=1 // pred_check
      _
    $region11: #{mean_shift_forward.1} parent=1 // pred_check_branch
      %86 = sbr.rel (0) target = $region13
    $region12: #{mean_shift_forward.1} parent=1 // pred_region
      _
    $region13: #{mean_shift_forward.1} parent=1 // pred_fallthru
      _
    // Predicated region
    $region14: #{mean_shift_forward.1} parent=1 // pred_check
      _
    $region15: #{mean_shift_forward.1} parent=1 // pred_check_branch
      %88 = sbr.rel (0) target = $region17
    $region16: #{mean_shift_forward.1} parent=1 // pred_region
      _
    $region17: #{mean_shift_forward.1} parent=1 // pred_fallthru
      _
    // Predicated region
    $region18: #{mean_shift_forward.1} parent=1 // pred_check
      _
    $region19: #{mean_shift_forward.1} parent=1 // pred_check_branch
      %90 = sbr.rel (0) target = $region21
    $region20: #{mean_shift_forward.1} parent=1 // pred_region
      _
    $region21: #{mean_shift_forward.1} parent=1 // pred_fallthru
      _
    // Predicated region
    $region22: #{mean_shift_forward.1} parent=1 // pred_check
      _
    $region23: #{mean_shift_forward.1} parent=1 // pred_check_branch
      %92 = sbr.rel (0) target = $region25
    $region24: #{mean_shift_forward.1} parent=1 // pred_region
      _
    $region25: #{mean_shift_forward.1} parent=1 // pred_fallthru
      _
    // Predicated region
    $region26: #{mean_shift_forward.1} parent=1 // pred_check
      _
    $region27: #{mean_shift_forward.1} parent=1 // pred_check_branch
      %94 = sbr.rel (0) target = $region29
    $region28: #{mean_shift_forward.1} parent=1 // pred_region
      _
    $region29: #{mean_shift_forward.1} parent=1 // pred_fallthru
      _
    // Predicated region
    $region30: #{mean_shift_forward.1} parent=1 // pred_check
      _
    $region31: #{mean_shift_forward.1} parent=1 // pred_check_branch
      %96 = sbr.rel (0) target = $region33
    $region32: #{mean_shift_forward.1} parent=1 // pred_region
      _
    $region33: #{mean_shift_forward.1} parent=1 // pred_fallthru
      _
    // Predicated region
    $region34: #{mean_shift_forward.1} parent=1 // pred_check
      _
    $region35: #{mean_shift_forward.1} parent=1 // pred_check_branch
      %98 = sbr.rel (0) target = $region37
    $region36: #{mean_shift_forward.1} parent=1 // pred_region
      _
    $region37: #{mean_shift_forward.1} parent=1 // pred_fallthru
      _
    // Predicated region
    $region38: #{mean_shift_forward.1} parent=1 // pred_check
      _
    $region39: #{mean_shift_forward.1} parent=1 // pred_check_branch
      %100 = sbr.rel (0) target = $region41
    $region40: #{mean_shift_forward.1} parent=1 // pred_region
      _
    $region41: #{mean_shift_forward.1} parent=1 // pred_fallthru
      _
    // Predicated region
    $region42: #{mean_shift_forward.1} parent=1 // pred_check
      _
    $region43: #{mean_shift_forward.1} parent=1 // pred_check_branch
      %102 = sbr.rel (0) target = $region45
    $region44: #{mean_shift_forward.1} parent=1 // pred_region
      _
    $region45: #{mean_shift_forward.1} parent=1 // pred_fallthru
      _
    // Predicated region
    $region46: #{mean_shift_forward.1} parent=1 // pred_check
      _
    $region47: #{mean_shift_forward.1} parent=1 // pred_check_branch
      %104 = sbr.rel (0) target = $region49
    $region48: #{mean_shift_forward.1} parent=1 // pred_region
      _
    $region49: #{mean_shift_forward.1} parent=1 // pred_fallthru
      _
    // Predicated region
    $region50: #{mean_shift_forward.1} parent=1 // pred_check
      _
    $region51: #{mean_shift_forward.1} parent=1 // pred_check_branch
      %106 = sbr.rel (0) target = $region53
    $region52: #{mean_shift_forward.1} parent=1 // pred_region
      _
    $region53: #{mean_shift_forward.1} parent=1 // pred_fallthru
      _
    // Predicated region
    $region54: #{mean_shift_forward.1} parent=1 // pred_check
      _
    $region55: #{mean_shift_forward.1} parent=1 // pred_check_branch
      %108 = sbr.rel (0) target = $region57
    $region56: #{mean_shift_forward.1} parent=1 // pred_region
      _
    $region57: #{mean_shift_forward.1} parent=1 // pred_fallthru
      _
    // Predicated region
    $region58: #{mean_shift_forward.1} parent=1 // pred_check
      _
    $region59: #{mean_shift_forward.1} parent=1 // pred_check_branch
      %110 = sbr.rel (0) target = $region61
    $region60: #{mean_shift_forward.1} parent=1 // pred_region
      _
    $region61: #{mean_shift_forward.1} parent=1 // pred_fallthru
      _
    // Predicated region
    $region62: #{mean_shift_forward.1} parent=1 // pred_check
      _
    $region63: #{mean_shift_forward.1} parent=1 // pred_check_branch
      %112 = sbr.rel (0) target = $region65
    $region64: #{mean_shift_forward.1} parent=1 // pred_region
      _
    $region65: #{mean_shift_forward.1} parent=1 // pred_fallthru
      _
    // Predicated region
    $region66: #{mean_shift_forward.1} parent=1 // pred_check
      _
    $region67: #{mean_shift_forward.1} parent=1 // pred_check_branch
      %114 = sbr.rel (0) target = $region69
    $region68: #{mean_shift_forward.1} parent=1 // pred_region
      _
    $region69: #{mean_shift_forward.1} parent=1 // pred_fallthru
      _
    // Predicated region
    $region70: #{mean_shift_forward.1} parent=1 // pred_check
      _
    $region71: #{mean_shift_forward.1} parent=1 // pred_check_branch
      %116 = sbr.rel (0) target = $region73
    $region72: #{mean_shift_forward.1} parent=1 // pred_region
      _
    $region73: #{mean_shift_forward.1} parent=1 // pred_fallthru
      _
    // Predicated region
    $region74: #{mean_shift_forward.1} parent=1 // pred_check
      _
    $region75: #{mean_shift_forward.1} parent=1 // pred_check_branch
      %118 = sbr.rel (0) target = $region77
    $region76: #{mean_shift_forward.1} parent=1 // pred_region
      _
    $region77: #{mean_shift_forward.1} parent=1 // pred_fallthru
      _
    // Predicated region
    $region78: #{mean_shift_forward.1} parent=1 // pred_check
      _
    $region79: #{mean_shift_forward.1} parent=1 // pred_check_branch
      %120 = sbr.rel (0) target = $region81
    $region80: #{mean_shift_forward.1} parent=1 // pred_region
      _
    $region81: #{mean_shift_forward.1} parent=1 // pred_fallthru
      _
    // Predicated region
    $region82: #{mean_shift_forward.1} parent=1 // pred_check
      _
    $region83: #{mean_shift_forward.1} parent=1 // pred_check_branch
      %122 = sbr.rel (0) target = $region85
    $region84: #{mean_shift_forward.1} parent=1 // pred_region
      _
    $region85: #{mean_shift_forward.1} parent=1 // pred_fallthru
      _
    // Predicated region
    $region86: #{mean_shift_forward.1} parent=1 // pred_check
      _
    $region87: #{mean_shift_forward.1} parent=1 // pred_check_branch
      %124 = sbr.rel (0) target = $region89
    $region88: #{mean_shift_forward.1} parent=1 // pred_region
      _
    $region89: #{mean_shift_forward.1} parent=1 // pred_fallthru
      _
    // Predicated region
    $region90: #{mean_shift_forward.1} parent=1 // pred_check
      _
    $region91: #{mean_shift_forward.1} parent=1 // pred_check_branch
      %126 = sbr.rel (0) target = $region93
    $region92: #{mean_shift_forward.1} parent=1 // pred_region
      _
    $region93: #{mean_shift_forward.1} parent=1 // pred_fallthru
      _
    // Predicated region
    $region94: #{mean_shift_forward.1} parent=1 // pred_check
      _
    $region95: #{mean_shift_forward.1} parent=1 // pred_check_branch
      %128 = sbr.rel (0) target = $region97
    $region96: #{mean_shift_forward.1} parent=1 // pred_region
      _
    $region97: #{mean_shift_forward.1} parent=1 // pred_fallthru
      _
    // Predicated region
    $region98: #{mean_shift_forward.1} parent=1 // pred_check
      _
    $region99: #{mean_shift_forward.1} parent=1 // pred_check_branch
      %130 = sbr.rel (0) target = $region101
    $region100: #{mean_shift_forward.1} parent=1 // pred_region
      _
    $region101: #{mean_shift_forward.1} parent=1 // pred_fallthru
      _
    // Predicated region
    $region102: #{mean_shift_forward.1} parent=1 // pred_check
      _
    $region103: #{mean_shift_forward.1} parent=1 // pred_check_branch
      %132 = sbr.rel (0) target = $region105
    $region104: #{mean_shift_forward.1} parent=1 // pred_region
      _
    $region105: #{mean_shift_forward.1} parent=1 // pred_fallthru
      _
    // Predicated region
    $region106: #{mean_shift_forward.1} parent=1 // pred_check
      _
    $region107: #{mean_shift_forward.1} parent=1 // pred_check_branch
      %134 = sbr.rel (0) target = $region109
    $region108: #{mean_shift_forward.1} parent=1 // pred_region
      _
    $region109: #{mean_shift_forward.1} parent=1 // pred_fallthru
      _
    %v135 = vld [vmem:[%s23] sm:$0xff]
    %v136 = vld [vmem:[%s23 + $0x8] sm:$0xff]
    %v137 = vld [vmem:[%s23 + $0x10] sm:$0xff]
    %v138 = vld [vmem:[%s23 + $0x18] sm:$0xff]
    %v139 = vld [vmem:[%s23 + $0x20] sm:$0xff]
    %v140 = vld [vmem:[%s23 + $0x28] sm:$0xff]
    %v141 = vld [vmem:[%s23 + $0x30] sm:$0xff]
    %v142 = vld [vmem:[%s23 + $0x38] sm:$0xff]
    %v143 = vld [vmem:[%s23 + $0x40] sm:$0xff]
    %v144 = vld [vmem:[%s23 + $0x48] sm:$0xff]
    %v145 = vld [vmem:[%s23 + $0x50] sm:$0xff]
    %v146 = vld [vmem:[%s23 + $0x58] sm:$0xff]
    %v147 = vld [vmem:[%s23 + $0x60] sm:$0xff]
    %v148 = vld [vmem:[%s23 + $0x68] sm:$0xff]
    %v149 = vld [vmem:[%s23 + $0x70] sm:$0xff]
    %v150 = vld [vmem:[%s23 + $0x78] sm:$0xff]
    %v151 = vld [vmem:[%s23 + $0x80] sm:$0xff]
    %v152 = vld [vmem:[%s23 + $0x88] sm:$0xff]
    %v153 = vld [vmem:[%s23 + $0x90] sm:$0xff]
    %v154 = vld [vmem:[%s23 + $0x98] sm:$0xff]
    %v155 = vld [vmem:[%s23 + $0xa0] sm:$0xff]
    %v156 = vld [vmem:[%s23 + $0xa8] sm:$0xff]
    %v157 = vld [vmem:[%s23 + $0xb0] sm:$0xff]
    %v158 = vld [vmem:[%s23 + $0xb8] sm:$0xff]
    %v159 = vld [vmem:[%s23 + $0xc0] sm:$0xff]
    %v160 = vld [vmem:[%s23 + $0xc8] sm:$0xff]
    %v161 = vld [vmem:[%s23 + $0xd0] sm:$0xff]
    %v162 = vld [vmem:[%s23 + $0xd8] sm:$0xff]
    %v163 = vld [vmem:[%s23 + $0xe0] sm:$0xff]
    %v164 = vld [vmem:[%s23 + $0xe8] sm:$0xff]
    %v165 = vld [vmem:[%s23 + $0xf0] sm:$0xff]
    %v166 = vld [vmem:[%s23 + $0xf8] sm:$0xff]
    %v167 = vld [vmem:[%s23 + $0x100] sm:$0xff]
    %v168 = vld [vmem:[%s23 + $0x108] sm:$0xff]
    %v169 = vld [vmem:[%s23 + $0x110] sm:$0xff]
    %v170 = vld [vmem:[%s23 + $0x118] sm:$0xff]
    %v171 = vld [vmem:[%s23 + $0x120] sm:$0xff]
    %v172 = vld [vmem:[%s23 + $0x128] sm:$0xff]
    %v173 = vld [vmem:[%s23 + $0x130] sm:$0xff]
    %v174 = vld [vmem:[%s23 + $0x138] sm:$0xff]
    %v175 = vld [vmem:[%s23 + $0x140] sm:$0xff]
    %v176 = vld [vmem:[%s23 + $0x148] sm:$0xff]
    %v177 = vld [vmem:[%s23 + $0x150] sm:$0xff]
    %v178 = vld [vmem:[%s23 + $0x158] sm:$0xff]
    %v179 = vld [vmem:[%s23 + $0x160] sm:$0xff]
    %v180 = vld [vmem:[%s23 + $0x168] sm:$0xff]
    %v181 = vld [vmem:[%s23 + $0x170] sm:$0xff]
    %v182 = vld [vmem:[%s23 + $0x178] sm:$0xff]
    %v183 = vld [vmem:[%s23 + $0x180] sm:$0xff]
    %v184 = vld [vmem:[%s23 + $0x188] sm:$0xff]
    %v185 = vld [vmem:[%s23 + $0x190] sm:$0xff]
    %v186 = vld [vmem:[%s23 + $0x198] sm:$0xff]
    %v187 = vld [vmem:[%s23 + $0x1a0] sm:$0xff]
    %v188 = vld [vmem:[%s23 + $0x1a8] sm:$0xff]
    %v189 = vld [vmem:[%s23 + $0x1b0] sm:$0xff]
    %v190 = vld [vmem:[%s23 + $0x1b8] sm:$0xff]
    %v191 = vld [vmem:[%s23 + $0x1c0] sm:$0xff]
    %v192 = vld [vmem:[%s23 + $0x1c8] sm:$0xff]
    %v193 = vld [vmem:[%s23 + $0x1d0] sm:$0xff]
    %v194 = vld [vmem:[%s23 + $0x1d8] sm:$0xff]
    %v195 = vld [vmem:[%s23 + $0x1e0] sm:$0xff]
    %v196 = vld [vmem:[%s23 + $0x1e8] sm:$0xff]
    %v197 = vld [vmem:[%s23 + $0x1f0] sm:$0xff]
    %v198 = vld [vmem:[%s23 + $0x1f8] sm:$0xff]
    %v199 = vld [vmem:[%s23 + $0x200] sm:$0xff]
    %v200 = vld [vmem:[%s23 + $0x208] sm:$0xff]
    %v201 = vld [vmem:[%s23 + $0x210] sm:$0xff]
    %v202 = vld [vmem:[%s23 + $0x218] sm:$0xff]
    %v203 = vld [vmem:[%s23 + $0x220] sm:$0xff]
    %v204 = vld [vmem:[%s23 + $0x228] sm:$0xff]
    %v205 = vld [vmem:[%s23 + $0x230] sm:$0xff]
    %v206 = vld [vmem:[%s23 + $0x238] sm:$0xff]
    %v207 = vld [vmem:[%s23 + $0x240] sm:$0xff]
    %v208 = vld [vmem:[%s23 + $0x248] sm:$0xff]
    %v209 = vld [vmem:[%s23 + $0x250] sm:$0xff]
    %v210 = vld [vmem:[%s23 + $0x258] sm:$0xff]
    %v211 = vld [vmem:[%s23 + $0x260] sm:$0xff]
    %v212 = vld [vmem:[%s23 + $0x268] sm:$0xff]
    %v213 = vld [vmem:[%s23 + $0x270] sm:$0xff]
    %v214 = vld [vmem:[%s23 + $0x278] sm:$0xff]
    %v215 = vld [vmem:[%s23 + $0x280] sm:$0xff]
    %v216 = vld [vmem:[%s23 + $0x288] sm:$0xff]
    %v217 = vld [vmem:[%s23 + $0x290] sm:$0xff]
    %v218 = vld [vmem:[%s23 + $0x298] sm:$0xff]
    %v219 = vld [vmem:[%s23 + $0x2a0] sm:$0xff]
    %v220 = vld [vmem:[%s23 + $0x2a8] sm:$0xff]
    %v221 = vld [vmem:[%s23 + $0x2b0] sm:$0xff]
    %v222 = vld [vmem:[%s23 + $0x2b8] sm:$0xff]
    %v223 = vld [vmem:[%s23 + $0x2c0] sm:$0xff]
    %v224 = vld [vmem:[%s23 + $0x2c8] sm:$0xff]
    %v225 = vld [vmem:[%s23 + $0x2d0] sm:$0xff]
    %v226 = vld [vmem:[%s23 + $0x2d8] sm:$0xff]
    %v227 = vld [vmem:[%s23 + $0x2e0] sm:$0xff]
    %v228 = vld [vmem:[%s23 + $0x2e8] sm:$0xff]
    %v229 = vld [vmem:[%s23 + $0x2f0] sm:$0xff]
    %v230 = vld [vmem:[%s23 + $0x2f8] sm:$0xff]
    %v231 = vmul.f32 %v135, 0.99
    %v232 = vmul.f32 %v136, 0.99
    %v233 = vmul.f32 %v137, 0.99
    %v234 = vmul.f32 %v138, 0.99
    %v235 = vmul.f32 %v139, 0.99
    %v236 = vmul.f32 %v140, 0.99
    %v237 = vmul.f32 %v141, 0.99
    %v238 = vmul.f32 %v142, 0.99
    %v239 = vmul.f32 %v143, 0.99
    %v240 = vmul.f32 %v144, 0.99
    %v241 = vmul.f32 %v145, 0.99
    %v242 = vmul.f32 %v146, 0.99
    %v243 = vmul.f32 %v147, 0.99
    %v244 = vmul.f32 %v148, 0.99
    %v245 = vmul.f32 %v149, 0.99
    %v246 = vmul.f32 %v150, 0.99
    %v247 = vmul.f32 %v151, 0.99
    %v248 = vmul.f32 %v152, 0.99
    %v249 = vmul.f32 %v153, 0.99
    %v250 = vmul.f32 %v154, 0.99
    %v251 = vmul.f32 %v155, 0.99
    %v252 = vmul.f32 %v156, 0.99
    %v253 = vmul.f32 %v157, 0.99
    %v254 = vmul.f32 %v158, 0.99
    %v255 = vmul.f32 %v159, 0.99
    %v256 = vmul.f32 %v160, 0.99
    %v257 = vmul.f32 %v161, 0.99
    %v258 = vmul.f32 %v162, 0.99
    %v259 = vmul.f32 %v163, 0.99
    %v260 = vmul.f32 %v164, 0.99
    %v261 = vmul.f32 %v165, 0.99
    %v262 = vmul.f32 %v166, 0.99
    %v263 = vmul.f32 %v167, 0.99
    %v264 = vmul.f32 %v168, 0.99
    %v265 = vmul.f32 %v169, 0.99
    %v266 = vmul.f32 %v170, 0.99
    %v267 = vmul.f32 %v171, 0.99
    %v268 = vmul.f32 %v172, 0.99
    %v269 = vmul.f32 %v173, 0.99
    %v270 = vmul.f32 %v174, 0.99
    %v271 = vmul.f32 %v175, 0.99
    %v272 = vmul.f32 %v176, 0.99
    %v273 = vmul.f32 %v177, 0.99
    %v274 = vmul.f32 %v178, 0.99
    %v275 = vmul.f32 %v179, 0.99
    %v276 = vmul.f32 %v180, 0.99
    %v277 = vmul.f32 %v181, 0.99
    %v278 = vmul.f32 %v182, 0.99
    %v279 = vmul.f32 %v183, 0.99
    %v280 = vmul.f32 %v184, 0.99
    %v281 = vmul.f32 %v185, 0.99
    %v282 = vmul.f32 %v186, 0.99
    %v283 = vmul.f32 %v187, 0.99
    %v284 = vmul.f32 %v188, 0.99
    %v285 = vmul.f32 %v189, 0.99
    %v286 = vmul.f32 %v190, 0.99
    %v287 = vmul.f32 %v191, 0.99
    %v288 = vmul.f32 %v192, 0.99
    %v289 = vmul.f32 %v193, 0.99
    %v290 = vmul.f32 %v194, 0.99
    %v291 = vmul.f32 %v195, 0.99
    %v292 = vmul.f32 %v196, 0.99
    %v293 = vmul.f32 %v197, 0.99
    %v294 = vmul.f32 %v198, 0.99
    %v295 = vmul.f32 %v199, 0.99
    %v296 = vmul.f32 %v200, 0.99
    %v297 = vmul.f32 %v201, 0.99
    %v298 = vmul.f32 %v202, 0.99
    %v299 = vmul.f32 %v203, 0.99
    %v300 = vmul.f32 %v204, 0.99
    %v301 = vmul.f32 %v205, 0.99
    %v302 = vmul.f32 %v206, 0.99
    %v303 = vmul.f32 %v207, 0.99
    %v304 = vmul.f32 %v208, 0.99
    %v305 = vmul.f32 %v209, 0.99
    %v306 = vmul.f32 %v210, 0.99
    %v307 = vmul.f32 %v211, 0.99
    %v308 = vmul.f32 %v212, 0.99
    %v309 = vmul.f32 %v213, 0.99
    %v310 = vmul.f32 %v214, 0.99
    %v311 = vmul.f32 %v215, 0.99
    %v312 = vmul.f32 %v216, 0.99
    %v313 = vmul.f32 %v217, 0.99
    %v314 = vmul.f32 %v218, 0.99
    %v315 = vmul.f32 %v219, 0.99
    %v316 = vmul.f32 %v220, 0.99
    %v317 = vmul.f32 %v221, 0.99
    %v318 = vmul.f32 %v222, 0.99
    %v319 = vmul.f32 %v223, 0.99
    %v320 = vmul.f32 %v224, 0.99
    %v321 = vmul.f32 %v225, 0.99
    %v322 = vmul.f32 %v226, 0.99
    %v323 = vmul.f32 %v227, 0.99
    %v324 = vmul.f32 %v228, 0.99
    %v325 = vmul.f32 %v229, 0.99
    %v326 = vmul.f32 %v230, 0.99
    %v327 = vld [vmem:[%s7] sm:$0xff]
    %v328 = vld [vmem:[%s7 + $0x8] sm:$0xff]
    %v329 = vld [vmem:[%s7 + $0x10] sm:$0xff]
    %v330 = vld [vmem:[%s7 + $0x18] sm:$0xff]
    %v331 = vld [vmem:[%s7 + $0x20] sm:$0xff]
    %v332 = vld [vmem:[%s7 + $0x28] sm:$0xff]
    %v333 = vld [vmem:[%s7 + $0x30] sm:$0xff]
    %v334 = vld [vmem:[%s7 + $0x38] sm:$0xff]
    %v335 = vld [vmem:[%s7 + $0x40] sm:$0xff]
    %v336 = vld [vmem:[%s7 + $0x48] sm:$0xff]
    %v337 = vld [vmem:[%s7 + $0x50] sm:$0xff]
    %v338 = vld [vmem:[%s7 + $0x58] sm:$0xff]
    %v339 = vld [vmem:[%s7 + $0x60] sm:$0xff]
    %v340 = vld [vmem:[%s7 + $0x68] sm:$0xff]
    %v341 = vld [vmem:[%s7 + $0x70] sm:$0xff]
    %v342 = vld [vmem:[%s7 + $0x78] sm:$0xff]
    %v343 = vld [vmem:[%s7 + $0x80] sm:$0xff]
    %v344 = vld [vmem:[%s7 + $0x88] sm:$0xff]
    %v345 = vld [vmem:[%s7 + $0x90] sm:$0xff]
    %v346 = vld [vmem:[%s7 + $0x98] sm:$0xff]
    %v347 = vld [vmem:[%s7 + $0xa0] sm:$0xff]
    %v348 = vld [vmem:[%s7 + $0xa8] sm:$0xff]
    %v349 = vld [vmem:[%s7 + $0xb0] sm:$0xff]
    %v350 = vld [vmem:[%s7 + $0xb8] sm:$0xff]
    %v351 = vld [vmem:[%s7 + $0xc0] sm:$0xff]
    %v352 = vld [vmem:[%s7 + $0xc8] sm:$0xff]
    %v353 = vld [vmem:[%s7 + $0xd0] sm:$0xff]
    %v354 = vld [vmem:[%s7 + $0xd8] sm:$0xff]
    %v355 = vld [vmem:[%s7 + $0xe0] sm:$0xff]
    %v356 = vld [vmem:[%s7 + $0xe8] sm:$0xff]
    %v357 = vld [vmem:[%s7 + $0xf0] sm:$0xff]
    %v358 = vld [vmem:[%s7 + $0xf8] sm:$0xff]
    %v359 = vld [vmem:[%s7 + $0x100] sm:$0xff]
    %v360 = vld [vmem:[%s7 + $0x108] sm:$0xff]
    %v361 = vld [vmem:[%s7 + $0x110] sm:$0xff]
    %v362 = vld [vmem:[%s7 + $0x118] sm:$0xff]
    %v363 = vld [vmem:[%s7 + $0x120] sm:$0xff]
    %v364 = vld [vmem:[%s7 + $0x128] sm:$0xff]
    %v365 = vld [vmem:[%s7 + $0x130] sm:$0xff]
    %v366 = vld [vmem:[%s7 + $0x138] sm:$0xff]
    %v367 = vld [vmem:[%s7 + $0x140] sm:$0xff]
    %v368 = vld [vmem:[%s7 + $0x148] sm:$0xff]
    %v369 = vld [vmem:[%s7 + $0x150] sm:$0xff]
    %v370 = vld [vmem:[%s7 + $0x158] sm:$0xff]
    %v371 = vld [vmem:[%s7 + $0x160] sm:$0xff]
    %v372 = vld [vmem:[%s7 + $0x168] sm:$0xff]
    %v373 = vld [vmem:[%s7 + $0x170] sm:$0xff]
    %v374 = vld [vmem:[%s7 + $0x178] sm:$0xff]
    %v375 = vld [vmem:[%s7 + $0x180] sm:$0xff]
    %v376 = vld [vmem:[%s7 + $0x188] sm:$0xff]
    %v377 = vld [vmem:[%s7 + $0x190] sm:$0xff]
    %v378 = vld [vmem:[%s7 + $0x198] sm:$0xff]
    %v379 = vld [vmem:[%s7 + $0x1a0] sm:$0xff]
    %v380 = vld [vmem:[%s7 + $0x1a8] sm:$0xff]
    %v381 = vld [vmem:[%s7 + $0x1b0] sm:$0xff]
    %v382 = vld [vmem:[%s7 + $0x1b8] sm:$0xff]
    %v383 = vld [vmem:[%s7 + $0x1c0] sm:$0xff]
    %v384 = vld [vmem:[%s7 + $0x1c8] sm:$0xff]
    %v385 = vld [vmem:[%s7 + $0x1d0] sm:$0xff]
    %v386 = vld [vmem:[%s7 + $0x1d8] sm:$0xff]
    %v387 = vld [vmem:[%s7 + $0x1e0] sm:$0xff]
    %v388 = vld [vmem:[%s7 + $0x1e8] sm:$0xff]
    %v389 = vld [vmem:[%s7 + $0x1f0] sm:$0xff]
    %v390 = vld [vmem:[%s7 + $0x1f8] sm:$0xff]
    %v391 = vld [vmem:[%s7 + $0x200] sm:$0xff]
    %v392 = vld [vmem:[%s7 + $0x208] sm:$0xff]
    %v393 = vld [vmem:[%s7 + $0x210] sm:$0xff]
    %v394 = vld [vmem:[%s7 + $0x218] sm:$0xff]
    %v395 = vld [vmem:[%s7 + $0x220] sm:$0xff]
    %v396 = vld [vmem:[%s7 + $0x228] sm:$0xff]
    %v397 = vld [vmem:[%s7 + $0x230] sm:$0xff]
    %v398 = vld [vmem:[%s7 + $0x238] sm:$0xff]
    %v399 = vld [vmem:[%s7 + $0x240] sm:$0xff]
    %v400 = vld [vmem:[%s7 + $0x248] sm:$0xff]
    %v401 = vld [vmem:[%s7 + $0x250] sm:$0xff]
    %v402 = vld [vmem:[%s7 + $0x258] sm:$0xff]
    %v403 = vld [vmem:[%s7 + $0x260] sm:$0xff]
    %v404 = vld [vmem:[%s7 + $0x268] sm:$0xff]
    %v405 = vld [vmem:[%s7 + $0x270] sm:$0xff]
    %v406 = vld [vmem:[%s7 + $0x278] sm:$0xff]
    %v407 = vld [vmem:[%s7 + $0x280] sm:$0xff]
    %v408 = vld [vmem:[%s7 + $0x288] sm:$0xff]
    %v409 = vld [vmem:[%s7 + $0x290] sm:$0xff]
    %v410 = vld [vmem:[%s7 + $0x298] sm:$0xff]
    %v411 = vld [vmem:[%s7 + $0x2a0] sm:$0xff]
    %v412 = vld [vmem:[%s7 + $0x2a8] sm:$0xff]
    %v413 = vld [vmem:[%s7 + $0x2b0] sm:$0xff]
    %v414 = vld [vmem:[%s7 + $0x2b8] sm:$0xff]
    %v415 = vld [vmem:[%s7 + $0x2c0] sm:$0xff]
    %v416 = vld [vmem:[%s7 + $0x2c8] sm:$0xff]
    %v417 = vld [vmem:[%s7 + $0x2d0] sm:$0xff]
    %v418 = vld [vmem:[%s7 + $0x2d8] sm:$0xff]
    %v419 = vld [vmem:[%s7 + $0x2e0] sm:$0xff]
    %v420 = vld [vmem:[%s7 + $0x2e8] sm:$0xff]
    %v421 = vld [vmem:[%s7 + $0x2f0] sm:$0xff]
    %v422 = vld [vmem:[%s7 + $0x2f8] sm:$0xff]
    %v423 = vmul.f32 %v327, 0.01
    %v424 = vmul.f32 %v328, 0.01
    %v425 = vmul.f32 %v329, 0.01
    %v426 = vmul.f32 %v330, 0.01
    %v427 = vmul.f32 %v331, 0.01
    %v428 = vmul.f32 %v332, 0.01
    %v429 = vmul.f32 %v333, 0.01
    %v430 = vmul.f32 %v334, 0.01
    %v431 = vmul.f32 %v335, 0.01
    %v432 = vmul.f32 %v336, 0.01
    %v433 = vmul.f32 %v337, 0.01
    %v434 = vmul.f32 %v338, 0.01
    %v435 = vmul.f32 %v339, 0.01
    %v436 = vmul.f32 %v340, 0.01
    %v437 = vmul.f32 %v341, 0.01
    %v438 = vmul.f32 %v342, 0.01
    %v439 = vmul.f32 %v343, 0.01
    %v440 = vmul.f32 %v344, 0.01
    %v441 = vmul.f32 %v345, 0.01
    %v442 = vmul.f32 %v346, 0.01
    %v443 = vmul.f32 %v347, 0.01
    %v444 = vmul.f32 %v348, 0.01
    %v445 = vmul.f32 %v349, 0.01
    %v446 = vmul.f32 %v350, 0.01
    %v447 = vmul.f32 %v351, 0.01
    %v448 = vmul.f32 %v352, 0.01
    %v449 = vmul.f32 %v353, 0.01
    %v450 = vmul.f32 %v354, 0.01
    %v451 = vmul.f32 %v355, 0.01
    %v452 = vmul.f32 %v356, 0.01
    %v453 = vmul.f32 %v357, 0.01
    %v454 = vmul.f32 %v358, 0.01
    %v455 = vmul.f32 %v359, 0.01
    %v456 = vmul.f32 %v360, 0.01
    %v457 = vmul.f32 %v361, 0.01
    %v458 = vmul.f32 %v362, 0.01
    %v459 = vmul.f32 %v363, 0.01
    %v460 = vmul.f32 %v364, 0.01
    %v461 = vmul.f32 %v365, 0.01
    %v462 = vmul.f32 %v366, 0.01
    %v463 = vmul.f32 %v367, 0.01
    %v464 = vmul.f32 %v368, 0.01
    %v465 = vmul.f32 %v369, 0.01
    %v466 = vmul.f32 %v370, 0.01
    %v467 = vmul.f32 %v371, 0.01
    %v468 = vmul.f32 %v372, 0.01
    %v469 = vmul.f32 %v373, 0.01
    %v470 = vmul.f32 %v374, 0.01
    %v471 = vmul.f32 %v375, 0.01
    %v472 = vmul.f32 %v376, 0.01
    %v473 = vmul.f32 %v377, 0.01
    %v474 = vmul.f32 %v378, 0.01
    %v475 = vmul.f32 %v379, 0.01
    %v476 = vmul.f32 %v380, 0.01
    %v477 = vmul.f32 %v381, 0.01
    %v478 = vmul.f32 %v382, 0.01
    %v479 = vmul.f32 %v383, 0.01
    %v480 = vmul.f32 %v384, 0.01
    %v481 = vmul.f32 %v385, 0.01
    %v482 = vmul.f32 %v386, 0.01
    %v483 = vmul.f32 %v387, 0.01
    %v484 = vmul.f32 %v388, 0.01
    %v485 = vmul.f32 %v389, 0.01
    %v486 = vmul.f32 %v390, 0.01
    %v487 = vmul.f32 %v391, 0.01
    %v488 = vmul.f32 %v392, 0.01
    %v489 = vmul.f32 %v393, 0.01
    %v490 = vmul.f32 %v394, 0.01
    %v491 = vmul.f32 %v395, 0.01
    %v492 = vmul.f32 %v396, 0.01
    %v493 = vmul.f32 %v397, 0.01
    %v494 = vmul.f32 %v398, 0.01
    %v495 = vmul.f32 %v399, 0.01
    %v496 = vmul.f32 %v400, 0.01
    %v497 = vmul.f32 %v401, 0.01
    %v498 = vmul.f32 %v402, 0.01
    %v499 = vmul.f32 %v403, 0.01
    %v500 = vmul.f32 %v404, 0.01
    %v501 = vmul.f32 %v405, 0.01
    %v502 = vmul.f32 %v406, 0.01
    %v503 = vmul.f32 %v407, 0.01
    %v504 = vmul.f32 %v408, 0.01
    %v505 = vmul.f32 %v409, 0.01
    %v506 = vmul.f32 %v410, 0.01
    %v507 = vmul.f32 %v411, 0.01
    %v508 = vmul.f32 %v412, 0.01
    %v509 = vmul.f32 %v413, 0.01
    %v510 = vmul.f32 %v414, 0.01
    %v511 = vmul.f32 %v415, 0.01
    %v512 = vmul.f32 %v416, 0.01
    %v513 = vmul.f32 %v417, 0.01
    %v514 = vmul.f32 %v418, 0.01
    %v515 = vmul.f32 %v419, 0.01
    %v516 = vmul.f32 %v420, 0.01
    %v517 = vmul.f32 %v421, 0.01
    %v518 = vmul.f32 %v422, 0.01
    %v519 = vadd.f32 %v231, %v423
    %v520 = vadd.f32 %v232, %v424
    %v521 = vadd.f32 %v233, %v425
    %v522 = vadd.f32 %v234, %v426
    %v523 = vadd.f32 %v235, %v427
    %v524 = vadd.f32 %v236, %v428
    %v525 = vadd.f32 %v237, %v429
    %v526 = vadd.f32 %v238, %v430
    %v527 = vadd.f32 %v239, %v431
    %v528 = vadd.f32 %v240, %v432
    %v529 = vadd.f32 %v241, %v433
    %v530 = vadd.f32 %v242, %v434
    %v531 = vadd.f32 %v243, %v435
    %v532 = vadd.f32 %v244, %v436
    %v533 = vadd.f32 %v245, %v437
    %v534 = vadd.f32 %v246, %v438
    %v535 = vadd.f32 %v247, %v439
    %v536 = vadd.f32 %v248, %v440
    %v537 = vadd.f32 %v249, %v441
    %v538 = vadd.f32 %v250, %v442
    %v539 = vadd.f32 %v251, %v443
    %v540 = vadd.f32 %v252, %v444
    %v541 = vadd.f32 %v253, %v445
    %v542 = vadd.f32 %v254, %v446
    %v543 = vadd.f32 %v255, %v447
    %v544 = vadd.f32 %v256, %v448
    %v545 = vadd.f32 %v257, %v449
    %v546 = vadd.f32 %v258, %v450
    %v547 = vadd.f32 %v259, %v451
    %v548 = vadd.f32 %v260, %v452
    %v549 = vadd.f32 %v261, %v453
    %v550 = vadd.f32 %v262, %v454
    %v551 = vadd.f32 %v263, %v455
    %v552 = vadd.f32 %v264, %v456
    %v553 = vadd.f32 %v265, %v457
    %v554 = vadd.f32 %v266, %v458
    %v555 = vadd.f32 %v267, %v459
    %v556 = vadd.f32 %v268, %v460
    %v557 = vadd.f32 %v269, %v461
    %v558 = vadd.f32 %v270, %v462
    %v559 = vadd.f32 %v271, %v463
    %v560 = vadd.f32 %v272, %v464
    %v561 = vadd.f32 %v273, %v465
    %v562 = vadd.f32 %v274, %v466
    %v563 = vadd.f32 %v275, %v467
    %v564 = vadd.f32 %v276, %v468
    %v565 = vadd.f32 %v277, %v469
    %v566 = vadd.f32 %v278, %v470
    %v567 = vadd.f32 %v279, %v471
    %v568 = vadd.f32 %v280, %v472
    %v569 = vadd.f32 %v281, %v473
    %v570 = vadd.f32 %v282, %v474
    %v571 = vadd.f32 %v283, %v475
    %v572 = vadd.f32 %v284, %v476
    %v573 = vadd.f32 %v285, %v477
    %v574 = vadd.f32 %v286, %v478
    %v575 = vadd.f32 %v287, %v479
    %v576 = vadd.f32 %v288, %v480
    %v577 = vadd.f32 %v289, %v481
    %v578 = vadd.f32 %v290, %v482
    %v579 = vadd.f32 %v291, %v483
    %v580 = vadd.f32 %v292, %v484
    %v581 = vadd.f32 %v293, %v485
    %v582 = vadd.f32 %v294, %v486
    %v583 = vadd.f32 %v295, %v487
    %v584 = vadd.f32 %v296, %v488
    %v585 = vadd.f32 %v297, %v489
    %v586 = vadd.f32 %v298, %v490
    %v587 = vadd.f32 %v299, %v491
    %v588 = vadd.f32 %v300, %v492
    %v589 = vadd.f32 %v301, %v493
    %v590 = vadd.f32 %v302, %v494
    %v591 = vadd.f32 %v303, %v495
    %v592 = vadd.f32 %v304, %v496
    %v593 = vadd.f32 %v305, %v497
    %v594 = vadd.f32 %v306, %v498
    %v595 = vadd.f32 %v307, %v499
    %v596 = vadd.f32 %v308, %v500
    %v597 = vadd.f32 %v309, %v501
    %v598 = vadd.f32 %v310, %v502
    %v599 = vadd.f32 %v311, %v503
    %v600 = vadd.f32 %v312, %v504
    %v601 = vadd.f32 %v313, %v505
    %v602 = vadd.f32 %v314, %v506
    %v603 = vadd.f32 %v315, %v507
    %v604 = vadd.f32 %v316, %v508
    %v605 = vadd.f32 %v317, %v509
    %v606 = vadd.f32 %v318, %v510
    %v607 = vadd.f32 %v319, %v511
    %v608 = vadd.f32 %v320, %v512
    %v609 = vadd.f32 %v321, %v513
    %v610 = vadd.f32 %v322, %v514
    %v611 = vadd.f32 %v323, %v515
    %v612 = vadd.f32 %v324, %v516
    %v613 = vadd.f32 %v325, %v517
    %v614 = vadd.f32 %v326, %v518
    %vm615 = vcmask 261120
    %616 = vst.msk [vmem:[%s59] sm:$0xff] %vm615, %v519
    %617 = vst.msk [vmem:[%s59 + $0x8] sm:$0xff] %vm615, %v520
    %618 = vst.msk [vmem:[%s59 + $0x10] sm:$0xff] %vm615, %v521
    %619 = vst.msk [vmem:[%s59 + $0x18] sm:$0xff] %vm615, %v522
    %620 = vst.msk [vmem:[%s59 + $0x20] sm:$0xff] %vm615, %v523
    %621 = vst.msk [vmem:[%s59 + $0x28] sm:$0xff] %vm615, %v524
    %622 = vst.msk [vmem:[%s59 + $0x30] sm:$0xff] %vm615, %v525
    %623 = vst.msk [vmem:[%s59 + $0x38] sm:$0xff] %vm615, %v526
    %624 = vst.msk [vmem:[%s59 + $0x40] sm:$0xff] %vm615, %v527
    %625 = vst.msk [vmem:[%s59 + $0x48] sm:$0xff] %vm615, %v528
    %626 = vst.msk [vmem:[%s59 + $0x50] sm:$0xff] %vm615, %v529
    %627 = vst.msk [vmem:[%s59 + $0x58] sm:$0xff] %vm615, %v530
    %628 = vst.msk [vmem:[%s59 + $0x60] sm:$0xff] %vm615, %v531
    %629 = vst.msk [vmem:[%s59 + $0x68] sm:$0xff] %vm615, %v532
    %630 = vst.msk [vmem:[%s59 + $0x70] sm:$0xff] %vm615, %v533
    %631 = vst.msk [vmem:[%s59 + $0x78] sm:$0xff] %vm615, %v534
    %632 = vst.msk [vmem:[%s59 + $0x80] sm:$0xff] %vm615, %v535
    %633 = vst.msk [vmem:[%s59 + $0x88] sm:$0xff] %vm615, %v536
    %634 = vst.msk [vmem:[%s59 + $0x90] sm:$0xff] %vm615, %v537
    %635 = vst.msk [vmem:[%s59 + $0x98] sm:$0xff] %vm615, %v538
    %636 = vst.msk [vmem:[%s59 + $0xa0] sm:$0xff] %vm615, %v539
    %637 = vst.msk [vmem:[%s59 + $0xa8] sm:$0xff] %vm615, %v540
    %638 = vst.msk [vmem:[%s59 + $0xb0] sm:$0xff] %vm615, %v541
    %639 = vst.msk [vmem:[%s59 + $0xb8] sm:$0xff] %vm615, %v542
    %640 = vst.msk [vmem:[%s59 + $0xc0] sm:$0xff] %vm615, %v543
    %641 = vst.msk [vmem:[%s59 + $0xc8] sm:$0xff] %vm615, %v544
    %642 = vst.msk [vmem:[%s59 + $0xd0] sm:$0xff] %vm615, %v545
    %643 = vst.msk [vmem:[%s59 + $0xd8] sm:$0xff] %vm615, %v546
    %644 = vst.msk [vmem:[%s59 + $0xe0] sm:$0xff] %vm615, %v547
    %645 = vst.msk [vmem:[%s59 + $0xe8] sm:$0xff] %vm615, %v548
    %646 = vst.msk [vmem:[%s59 + $0xf0] sm:$0xff] %vm615, %v549
    %647 = vst.msk [vmem:[%s59 + $0xf8] sm:$0xff] %vm615, %v550
    %648 = vst.msk [vmem:[%s59 + $0x100] sm:$0xff] %vm615, %v551
    %649 = vst.msk [vmem:[%s59 + $0x108] sm:$0xff] %vm615, %v552
    %650 = vst.msk [vmem:[%s59 + $0x110] sm:$0xff] %vm615, %v553
    %651 = vst.msk [vmem:[%s59 + $0x118] sm:$0xff] %vm615, %v554
    %652 = vst.msk [vmem:[%s59 + $0x120] sm:$0xff] %vm615, %v555
    %653 = vst.msk [vmem:[%s59 + $0x128] sm:$0xff] %vm615, %v556
    %654 = vst.msk [vmem:[%s59 + $0x130] sm:$0xff] %vm615, %v557
    %655 = vst.msk [vmem:[%s59 + $0x138] sm:$0xff] %vm615, %v558
    %656 = vst.msk [vmem:[%s59 + $0x140] sm:$0xff] %vm615, %v559
    %657 = vst.msk [vmem:[%s59 + $0x148] sm:$0xff] %vm615, %v560
    %658 = vst.msk [vmem:[%s59 + $0x150] sm:$0xff] %vm615, %v561
    %659 = vst.msk [vmem:[%s59 + $0x158] sm:$0xff] %vm615, %v562
    %660 = vst.msk [vmem:[%s59 + $0x160] sm:$0xff] %vm615, %v563
    %661 = vst.msk [vmem:[%s59 + $0x168] sm:$0xff] %vm615, %v564
    %662 = vst.msk [vmem:[%s59 + $0x170] sm:$0xff] %vm615, %v565
    %663 = vst.msk [vmem:[%s59 + $0x178] sm:$0xff] %vm615, %v566
    %664 = vst.msk [vmem:[%s59 + $0x180] sm:$0xff] %vm615, %v567
    %665 = vst.msk [vmem:[%s59 + $0x188] sm:$0xff] %vm615, %v568
    %666 = vst.msk [vmem:[%s59 + $0x190] sm:$0xff] %vm615, %v569
    %667 = vst.msk [vmem:[%s59 + $0x198] sm:$0xff] %vm615, %v570
    %668 = vst.msk [vmem:[%s59 + $0x1a0] sm:$0xff] %vm615, %v571
    %669 = vst.msk [vmem:[%s59 + $0x1a8] sm:$0xff] %vm615, %v572
    %670 = vst.msk [vmem:[%s59 + $0x1b0] sm:$0xff] %vm615, %v573
    %671 = vst.msk [vmem:[%s59 + $0x1b8] sm:$0xff] %vm615, %v574
    %672 = vst.msk [vmem:[%s59 + $0x1c0] sm:$0xff] %vm615, %v575
    %673 = vst.msk [vmem:[%s59 + $0x1c8] sm:$0xff] %vm615, %v576
    %674 = vst.msk [vmem:[%s59 + $0x1d0] sm:$0xff] %vm615, %v577
    %675 = vst.msk [vmem:[%s59 + $0x1d8] sm:$0xff] %vm615, %v578
    %676 = vst.msk [vmem:[%s59 + $0x1e0] sm:$0xff] %vm615, %v579
    %677 = vst.msk [vmem:[%s59 + $0x1e8] sm:$0xff] %vm615, %v580
    %678 = vst.msk [vmem:[%s59 + $0x1f0] sm:$0xff] %vm615, %v581
    %679 = vst.msk [vmem:[%s59 + $0x1f8] sm:$0xff] %vm615, %v582
    %680 = vst.msk [vmem:[%s59 + $0x200] sm:$0xff] %vm615, %v583
    %681 = vst.msk [vmem:[%s59 + $0x208] sm:$0xff] %vm615, %v584
    %682 = vst.msk [vmem:[%s59 + $0x210] sm:$0xff] %vm615, %v585
    %683 = vst.msk [vmem:[%s59 + $0x218] sm:$0xff] %vm615, %v586
    %684 = vst.msk [vmem:[%s59 + $0x220] sm:$0xff] %vm615, %v587
    %685 = vst.msk [vmem:[%s59 + $0x228] sm:$0xff] %vm615, %v588
    %686 = vst.msk [vmem:[%s59 + $0x230] sm:$0xff] %vm615, %v589
    %687 = vst.msk [vmem:[%s59 + $0x238] sm:$0xff] %vm615, %v590
    %688 = vst.msk [vmem:[%s59 + $0x240] sm:$0xff] %vm615, %v591
    %689 = vst.msk [vmem:[%s59 + $0x248] sm:$0xff] %vm615, %v592
    %690 = vst.msk [vmem:[%s59 + $0x250] sm:$0xff] %vm615, %v593
    %691 = vst.msk [vmem:[%s59 + $0x258] sm:$0xff] %vm615, %v594
    %692 = vst.msk [vmem:[%s59 + $0x260] sm:$0xff] %vm615, %v595
    %693 = vst.msk [vmem:[%s59 + $0x268] sm:$0xff] %vm615, %v596
    %694 = vst.msk [vmem:[%s59 + $0x270] sm:$0xff] %vm615, %v597
    %695 = vst.msk [vmem:[%s59 + $0x278] sm:$0xff] %vm615, %v598
    %696 = vst.msk [vmem:[%s59 + $0x280] sm:$0xff] %vm615, %v599
    %697 = vst.msk [vmem:[%s59 + $0x288] sm:$0xff] %vm615, %v600
    %698 = vst.msk [vmem:[%s59 + $0x290] sm:$0xff] %vm615, %v601
    %699 = vst.msk [vmem:[%s59 + $0x298] sm:$0xff] %vm615, %v602
    %700 = vst.msk [vmem:[%s59 + $0x2a0] sm:$0xff] %vm615, %v603
    %701 = vst.msk [vmem:[%s59 + $0x2a8] sm:$0xff] %vm615, %v604
    %702 = vst.msk [vmem:[%s59 + $0x2b0] sm:$0xff] %vm615, %v605
    %703 = vst.msk [vmem:[%s59 + $0x2b8] sm:$0xff] %vm615, %v606
    %704 = vst.msk [vmem:[%s59 + $0x2c0] sm:$0xff] %vm615, %v607
    %705 = vst.msk [vmem:[%s59 + $0x2c8] sm:$0xff] %vm615, %v608
    %706 = vst.msk [vmem:[%s59 + $0x2d0] sm:$0xff] %vm615, %v609
    %707 = vst.msk [vmem:[%s59 + $0x2d8] sm:$0xff] %vm615, %v610
    %708 = vst.msk [vmem:[%s59 + $0x2e0] sm:$0xff] %vm615, %v611
    %709 = vst.msk [vmem:[%s59 + $0x2e8] sm:$0xff] %vm615, %v612
    %710 = vst.msk [vmem:[%s59 + $0x2f0] sm:$0xff] %vm615, %v613
    %711 = vst.msk [vmem:[%s59 + $0x2f8] sm:$0xff] %vm615, %v614
    %v712 = vld [vmem:[%s25] sm:$0x1]
    %v713 = vmul.f32 %v712, 0.99
    %v714 = vld [vmem:[%s9] sm:$0x1]
    %v715 = vmul.f32 %v714, 0.01
    %v716 = vadd.f32 %v713, %v715
    %vm717 = vcmask 253952
    %718 = vst.msk [vmem:[%s61] sm:$0x1] %vm717, %v716
    %v719 = vld [vmem:[%s27] sm:$0xff]
    %v720 = vld [vmem:[%s27 + $0x8] sm:$0xff]
    %v721 = vld [vmem:[%s27 + $0x10] sm:$0xff]
    %v722 = vld [vmem:[%s27 + $0x18] sm:$0xff]
    %v723 = vmul.f32 %v719, 0.99
    %v724 = vmul.f32 %v720, 0.99
    %v725 = vmul.f32 %v721, 0.99
    %v726 = vmul.f32 %v722, 0.99
    %v727 = vld [vmem:[%s11] sm:$0xff]
    %v728 = vld [vmem:[%s11 + $0x8] sm:$0xff]
    %v729 = vld [vmem:[%s11 + $0x10] sm:$0xff]
    %v730 = vld [vmem:[%s11 + $0x18] sm:$0xff]
    %v731 = vmul.f32 %v727, 0.01
    %v732 = vmul.f32 %v728, 0.01
    %v733 = vmul.f32 %v729, 0.01
    %v734 = vmul.f32 %v730, 0.01
    %v735 = vadd.f32 %v723, %v731
    %v736 = vadd.f32 %v724, %v732
    %v737 = vadd.f32 %v725, %v733
    %v738 = vadd.f32 %v726, %v734
    %vm739 = vcmask 523264
    %740 = vst.msk [vmem:[%s63] sm:$0xff] %vm739, %v735
    %741 = vst.msk [vmem:[%s63 + $0x8] sm:$0xff] %vm739, %v736
    %742 = vst.msk [vmem:[%s63 + $0x10] sm:$0xff] %vm739, %v737
    %743 = vst.msk [vmem:[%s63 + $0x18] sm:$0xff] %vm739, %v738
    %v744 = vld [vmem:[%s29] sm:$0x1]
    %v745 = vmul.f32 %v744, 0.99
    %v746 = vld [vmem:[%s13] sm:$0x1]
    %v747 = vmul.f32 %v746, 0.01
    %v748 = vadd.f32 %v745, %v747
    %vm749 = vcmask 516096
    %750 = vst.msk [vmem:[%s65] sm:$0x1] %vm749, %v748
    %v751 = vld [vmem:[%s31] sm:$0x1]
    %v752 = vmul.f32 %v751, 0.99
    %v753 = vld [vmem:[%s15] sm:$0x1]
    %v754 = vmul.f32 %v753, 0.01
    %v755 = vadd.f32 %v752, %v754
    %756 = vst.msk [vmem:[%s67] sm:$0x1] %vm749, %v755
    %v757 = vld [vmem:[%s33] sm:$0x1]
    %v758 = vmul.f32 %v757, 0.99
    %v759 = vld [vmem:[%s17] sm:$0x1]
    %v760 = vmul.f32 %v759, 0.01
    %v761 = vadd.f32 %v758, %v760
    %762 = vst.msk [vmem:[%s69] sm:$0x1] %vm749, %v761
    %v763 = vld [vmem:[%s35] sm:$0xff]
    %v764 = vld [vmem:[%s35 + $0x8] sm:$0xff]
    %v765 = vld [vmem:[%s35 + $0x10] sm:$0xff]
    %v766 = vld [vmem:[%s35 + $0x18] sm:$0xff]
    %v767 = vld [vmem:[%s35 + $0x20] sm:$0xff]
    %v768 = vld [vmem:[%s35 + $0x28] sm:$0xff]
    %v769 = vld [vmem:[%s35 + $0x30] sm:$0xff]
    %v770 = vld [vmem:[%s35 + $0x38] sm:$0xff]
    %v771 = vmul.f32 %v763, 0.99
    %v772 = vmul.f32 %v764, 0.99
    %v773 = vmul.f32 %v765, 0.99
    %v774 = vmul.f32 %v766, 0.99
    %v775 = vmul.f32 %v767, 0.99
    %v776 = vmul.f32 %v768, 0.99
    %v777 = vmul.f32 %v769, 0.99
    %v778 = vmul.f32 %v770, 0.99
    %v779 = vld [vmem:[%s19] sm:$0xff]
    %v780 = vld [vmem:[%s19 + $0x8] sm:$0xff]
    %v781 = vld [vmem:[%s19 + $0x10] sm:$0xff]
    %v782 = vld [vmem:[%s19 + $0x18] sm:$0xff]
    %v783 = vld [vmem:[%s19 + $0x20] sm:$0xff]
    %v784 = vld [vmem:[%s19 + $0x28] sm:$0xff]
    %v785 = vld [vmem:[%s19 + $0x30] sm:$0xff]
    %v786 = vld [vmem:[%s19 + $0x38] sm:$0xff]
    %v787 = vmul.f32 %v779, 0.01
    %v788 = vmul.f32 %v780, 0.01
    %v789 = vmul.f32 %v781, 0.01
    %v790 = vmul.f32 %v782, 0.01
    %v791 = vmul.f32 %v783, 0.01
    %v792 = vmul.f32 %v784, 0.01
    %v793 = vmul.f32 %v785, 0.01
    %v794 = vmul.f32 %v786, 0.01
    %v795 = vadd.f32 %v771, %v787
    %v796 = vadd.f32 %v772, %v788
    %v797 = vadd.f32 %v773, %v789
    %v798 = vadd.f32 %v774, %v790
    %v799 = vadd.f32 %v775, %v791
    %v800 = vadd.f32 %v776, %v792
    %v801 = vadd.f32 %v777, %v793
    %v802 = vadd.f32 %v778, %v794
    %vm803 = vcmask 130048
    %804 = vst.msk [vmem:[%s71] sm:$0xff] %vm803, %v795
    %805 = vst.msk [vmem:[%s71 + $0x8] sm:$0xff] %vm803, %v796
    %806 = vst.msk [vmem:[%s71 + $0x10] sm:$0xff] %vm803, %v797
    %807 = vst.msk [vmem:[%s71 + $0x18] sm:$0xff] %vm803, %v798
    %808 = vst.msk [vmem:[%s71 + $0x20] sm:$0xff] %vm803, %v799
    %809 = vst.msk [vmem:[%s71 + $0x28] sm:$0xff] %vm803, %v800
    %810 = vst.msk [vmem:[%s71 + $0x30] sm:$0xff] %vm803, %v801
    %811 = vst.msk [vmem:[%s71 + $0x38] sm:$0xff] %vm803, %v802
    %v812 = vld [vmem:[%s37] sm:$0x1]
    %v813 = vmul.f32 %v812, 0.99
    %v814 = vld [vmem:[%s21] sm:$0x1]
    %v815 = vmul.f32 %v814, 0.01
    %v816 = vadd.f32 %v813, %v815
    %vm817 = vcmask 122880
    %818 = vst.msk [vmem:[%s73] sm:$0x1] %vm817, %v816
    %v819 = vld [vmem:[%s1] sm:$0xff]
    %v820 = vld [vmem:[%s1 + $0x8] sm:$0xff]
    %v821 = vld [vmem:[%s1 + $0x10] sm:$0xff]
    %v822 = vld [vmem:[%s1 + $0x18] sm:$0xff]
    %v823 = vld [vmem:[%s1 + $0x20] sm:$0xff]
    %v824 = vld [vmem:[%s1 + $0x28] sm:$0xff]
    %v825 = vld [vmem:[%s7] sm:$0xff]
    %v826 = vld [vmem:[%s7 + $0x8] sm:$0xff]
    %v827 = vld [vmem:[%s7 + $0x10] sm:$0xff]
    %v828 = vld [vmem:[%s7 + $0x18] sm:$0xff]
    %v829 = vld [vmem:[%s7 + $0x20] sm:$0xff]
    %v830 = vld [vmem:[%s7 + $0x28] sm:$0xff]
    %v831 = vld [vmem:[%s7 + $0x30] sm:$0xff]
    %v832 = vld [vmem:[%s7 + $0x38] sm:$0xff]
    %v833 = vld [vmem:[%s7 + $0x40] sm:$0xff]
    %v834 = vld [vmem:[%s7 + $0x48] sm:$0xff]
    %v835 = vld [vmem:[%s7 + $0x50] sm:$0xff]
    %v836 = vld [vmem:[%s7 + $0x58] sm:$0xff]
    %v837 = vld [vmem:[%s7 + $0x60] sm:$0xff]
    %v838 = vld [vmem:[%s7 + $0x68] sm:$0xff]
    %v839 = vld [vmem:[%s7 + $0x70] sm:$0xff]
    %v840 = vld [vmem:[%s7 + $0x78] sm:$0xff]
    %v841 = vld [vmem:[%s7 + $0x80] sm:$0xff]
    %v842 = vld [vmem:[%s7 + $0x88] sm:$0xff]
    %v843 = vld [vmem:[%s7 + $0x90] sm:$0xff]
    %v844 = vld [vmem:[%s7 + $0x98] sm:$0xff]
    %v845 = vld [vmem:[%s7 + $0xa0] sm:$0xff]
    %v846 = vld [vmem:[%s7 + $0xa8] sm:$0xff]
    %v847 = vld [vmem:[%s7 + $0xb0] sm:$0xff]
    %v848 = vld [vmem:[%s7 + $0xb8] sm:$0xff]
    %v849 = vld [vmem:[%s7 + $0xc0] sm:$0xff]
    %v850 = vld [vmem:[%s7 + $0xc8] sm:$0xff]
    %v851 = vld [vmem:[%s7 + $0xd0] sm:$0xff]
    %v852 = vld [vmem:[%s7 + $0xd8] sm:$0xff]
    %v853 = vld [vmem:[%s7 + $0xe0] sm:$0xff]
    %v854 = vld [vmem:[%s7 + $0xe8] sm:$0xff]
    %v855 = vld [vmem:[%s7 + $0xf0] sm:$0xff]
    %v856 = vld [vmem:[%s7 + $0xf8] sm:$0xff]
    %v857 = vld [vmem:[%s7 + $0x100] sm:$0xff]
    %v858 = vld [vmem:[%s7 + $0x108] sm:$0xff]
    %v859 = vld [vmem:[%s7 + $0x110] sm:$0xff]
    %v860 = vld [vmem:[%s7 + $0x118] sm:$0xff]
    %v861 = vld [vmem:[%s7 + $0x120] sm:$0xff]
    %v862 = vld [vmem:[%s7 + $0x128] sm:$0xff]
    %v863 = vld [vmem:[%s7 + $0x130] sm:$0xff]
    %v864 = vld [vmem:[%s7 + $0x138] sm:$0xff]
    %v865 = vld [vmem:[%s7 + $0x140] sm:$0xff]
    %v866 = vld [vmem:[%s7 + $0x148] sm:$0xff]
    %v867 = vld [vmem:[%s7 + $0x150] sm:$0xff]
    %v868 = vld [vmem:[%s7 + $0x158] sm:$0xff]
    %v869 = vld [vmem:[%s7 + $0x160] sm:$0xff]
    %v870 = vld [vmem:[%s7 + $0x168] sm:$0xff]
    %v871 = vld [vmem:[%s7 + $0x170] sm:$0xff]
    %v872 = vld [vmem:[%s7 + $0x178] sm:$0xff]
    %v873 = vld [vmem:[%s7 + $0x180] sm:$0xff]
    %v874 = vld [vmem:[%s7 + $0x188] sm:$0xff]
    %v875 = vld [vmem:[%s7 + $0x190] sm:$0xff]
    %v876 = vld [vmem:[%s7 + $0x198] sm:$0xff]
    %v877 = vld [vmem:[%s7 + $0x1a0] sm:$0xff]
    %v878 = vld [vmem:[%s7 + $0x1a8] sm:$0xff]
    %v879 = vld [vmem:[%s7 + $0x1b0] sm:$0xff]
    %v880 = vld [vmem:[%s7 + $0x1b8] sm:$0xff]
    %v881 = vld [vmem:[%s7 + $0x1c0] sm:$0xff]
    %v882 = vld [vmem:[%s7 + $0x1c8] sm:$0xff]
    %v883 = vld [vmem:[%s7 + $0x1d0] sm:$0xff]
    %v884 = vld [vmem:[%s7 + $0x1d8] sm:$0xff]
    %v885 = vld [vmem:[%s7 + $0x1e0] sm:$0xff]
    %v886 = vld [vmem:[%s7 + $0x1e8] sm:$0xff]
    %v887 = vld [vmem:[%s7 + $0x1f0] sm:$0xff]
    %v888 = vld [vmem:[%s7 + $0x1f8] sm:$0xff]
    %v889 = vld [vmem:[%s7 + $0x200] sm:$0xff]
    %v890 = vld [vmem:[%s7 + $0x208] sm:$0xff]
    %v891 = vld [vmem:[%s7 + $0x210] sm:$0xff]
    %v892 = vld [vmem:[%s7 + $0x218] sm:$0xff]
    %v893 = vld [vmem:[%s7 + $0x220] sm:$0xff]
    %v894 = vld [vmem:[%s7 + $0x228] sm:$0xff]
    %v895 = vld [vmem:[%s7 + $0x230] sm:$0xff]
    %v896 = vld [vmem:[%s7 + $0x238] sm:$0xff]
    %v897 = vld [vmem:[%s7 + $0x240] sm:$0xff]
    %v898 = vld [vmem:[%s7 + $0x248] sm:$0xff]
    %v899 = vld [vmem:[%s7 + $0x250] sm:$0xff]
    %v900 = vld [vmem:[%s7 + $0x258] sm:$0xff]
    %v901 = vld [vmem:[%s7 + $0x260] sm:$0xff]
    %v902 = vld [vmem:[%s7 + $0x268] sm:$0xff]
    %v903 = vld [vmem:[%s7 + $0x270] sm:$0xff]
    %v904 = vld [vmem:[%s7 + $0x278] sm:$0xff]
    %v905 = vld [vmem:[%s7 + $0x280] sm:$0xff]
    %v906 = vld [vmem:[%s7 + $0x288] sm:$0xff]
    %v907 = vld [vmem:[%s7 + $0x290] sm:$0xff]
    %v908 = vld [vmem:[%s7 + $0x298] sm:$0xff]
    %v909 = vld [vmem:[%s7 + $0x2a0] sm:$0xff]
    %v910 = vld [vmem:[%s7 + $0x2a8] sm:$0xff]
    %v911 = vld [vmem:[%s7 + $0x2b0] sm:$0xff]
    %v912 = vld [vmem:[%s7 + $0x2b8] sm:$0xff]
    %v913 = vld [vmem:[%s7 + $0x2c0] sm:$0xff]
    %v914 = vld [vmem:[%s7 + $0x2c8] sm:$0xff]
    %v915 = vld [vmem:[%s7 + $0x2d0] sm:$0xff]
    %v916 = vld [vmem:[%s7 + $0x2d8] sm:$0xff]
    %v917 = vld [vmem:[%s7 + $0x2e0] sm:$0xff]
    %v918 = vld [vmem:[%s7 + $0x2e8] sm:$0xff]
    %v919 = vld [vmem:[%s7 + $0x2f0] sm:$0xff]
    %v920 = vld [vmem:[%s7 + $0x2f8] sm:$0xff]
    %v921 = vld [vmem:[%s9] sm:$0x1]
    %v923 = vperm.slane %v921, 0
    %925 = vmatpush.msra.mxu0 %v840
    %926 = vmatpush.msra.mxu0 %v839
    %927 = vmatpush.msra.mxu0 %v838
    %928 = vmatpush.msra.mxu0 %v837
    %929 = vmatpush.msra.mxu0 %v836
    %930 = vmatpush.msra.mxu0 %v835
    %931 = vmatpush.msra.mxu0 %v834
    %932 = vmatpush.msra.mxu0 %v833
    %933 = vmatpush.msra.mxu0 %v832
    %934 = vmatpush.msra.mxu0 %v831
    %935 = vmatpush.msra.mxu0 %v830
    %936 = vmatpush.msra.mxu0 %v829
    %937 = vmatpush.msra.mxu0 %v828
    %938 = vmatpush.msra.mxu0 %v827
    %939 = vmatpush.msra.mxu0 %v826
    %940 = vmatpush.msra.mxu0 %v825
    %941 = vmatmul.f32.gmra.mxu0 %v819
    %v942 = vpop.f32.mrf.mxu0
    %v943 = vadd.f32 %v923, %v942
    %944 = vdwg.mxu0
    %945 = vmatpush.msra.mxu0 %v856
    %946 = vmatpush.msra.mxu0 %v855
    %947 = vmatpush.msra.mxu0 %v854
    %948 = vmatpush.msra.mxu0 %v853
    %949 = vmatpush.msra.mxu0 %v852
    %950 = vmatpush.msra.mxu0 %v851
    %951 = vmatpush.msra.mxu0 %v850
    %952 = vmatpush.msra.mxu0 %v849
    %953 = vmatpush.msra.mxu0 %v848
    %954 = vmatpush.msra.mxu0 %v847
    %955 = vmatpush.msra.mxu0 %v846
    %956 = vmatpush.msra.mxu0 %v845
    %957 = vmatpush.msra.mxu0 %v844
    %958 = vmatpush.msra.mxu0 %v843
    %959 = vmatpush.msra.mxu0 %v842
    %960 = vmatpush.msra.mxu0 %v841
    %961 = vmatmul.f32.gmra.mxu0 %v820
    %v962 = vpop.f32.mrf.mxu0
    %v963 = vadd.f32 %v943, %v962
    %964 = vdwg.mxu0
    %965 = vmatpush.msra.mxu0 %v872
    %966 = vmatpush.msra.mxu0 %v871
    %967 = vmatpush.msra.mxu0 %v870
    %968 = vmatpush.msra.mxu0 %v869
    %969 = vmatpush.msra.mxu0 %v868
    %970 = vmatpush.msra.mxu0 %v867
    %971 = vmatpush.msra.mxu0 %v866
    %972 = vmatpush.msra.mxu0 %v865
    %973 = vmatpush.msra.mxu0 %v864
    %974 = vmatpush.msra.mxu0 %v863
    %975 = vmatpush.msra.mxu0 %v862
    %976 = vmatpush.msra.mxu0 %v861
    %977 = vmatpush.msra.mxu0 %v860
    %978 = vmatpush.msra.mxu0 %v859
    %979 = vmatpush.msra.mxu0 %v858
    %980 = vmatpush.msra.mxu0 %v857
    %981 = vmatmul.f32.gmra.mxu0 %v821
    %v982 = vpop.f32.mrf.mxu0
    %v983 = vadd.f32 %v963, %v982
    %984 = vdwg.mxu0
    %985 = vmatpush.msra.mxu0 %v888
    %986 = vmatpush.msra.mxu0 %v887
    %987 = vmatpush.msra.mxu0 %v886
    %988 = vmatpush.msra.mxu0 %v885
    %989 = vmatpush.msra.mxu0 %v884
    %990 = vmatpush.msra.mxu0 %v883
    %991 = vmatpush.msra.mxu0 %v882
    %992 = vmatpush.msra.mxu0 %v881
    %993 = vmatpush.msra.mxu0 %v880
    %994 = vmatpush.msra.mxu0 %v879
    %995 = vmatpush.msra.mxu0 %v878
    %996 = vmatpush.msra.mxu0 %v877
    %997 = vmatpush.msra.mxu0 %v876
    %998 = vmatpush.msra.mxu0 %v875
    %999 = vmatpush.msra.mxu0 %v874
    %1000 = vmatpush.msra.mxu0 %v873
    %1001 = vmatmul.f32.gmra.mxu0 %v822
    %v1002 = vpop.f32.mrf.mxu0
    %v1003 = vadd.f32 %v983, %v1002
    %1004 = vdwg.mxu0
    %1005 = vmatpush.msra.mxu0 %v904
    %1006 = vmatpush.msra.mxu0 %v903
    %1007 = vmatpush.msra.mxu0 %v902
    %1008 = vmatpush.msra.mxu0 %v901
    %1009 = vmatpush.msra.mxu0 %v900
    %1010 = vmatpush.msra.mxu0 %v899
    %1011 = vmatpush.msra.mxu0 %v898
    %1012 = vmatpush.msra.mxu0 %v897
    %1013 = vmatpush.msra.mxu0 %v896
    %1014 = vmatpush.msra.mxu0 %v895
    %1015 = vmatpush.msra.mxu0 %v894
    %1016 = vmatpush.msra.mxu0 %v893
    %1017 = vmatpush.msra.mxu0 %v892
    %1018 = vmatpush.msra.mxu0 %v891
    %1019 = vmatpush.msra.mxu0 %v890
    %1020 = vmatpush.msra.mxu0 %v889
    %1021 = vmatmul.f32.gmra.mxu0 %v823
    %v1022 = vpop.f32.mrf.mxu0
    %v1023 = vadd.f32 %v1003, %v1022
    %1024 = vdwg.mxu0
    %1025 = vmatpush.msra.mxu0 %v920
    %1026 = vmatpush.msra.mxu0 %v919
    %1027 = vmatpush.msra.mxu0 %v918
    %1028 = vmatpush.msra.mxu0 %v917
    %1029 = vmatpush.msra.mxu0 %v916
    %1030 = vmatpush.msra.mxu0 %v915
    %1031 = vmatpush.msra.mxu0 %v914
    %1032 = vmatpush.msra.mxu0 %v913
    %1033 = vmatpush.msra.mxu0 %v912
    %1034 = vmatpush.msra.mxu0 %v911
    %1035 = vmatpush.msra.mxu0 %v910
    %1036 = vmatpush.msra.mxu0 %v909
    %1037 = vmatpush.msra.mxu0 %v908
    %1038 = vmatpush.msra.mxu0 %v907
    %1039 = vmatpush.msra.mxu0 %v906
    %1040 = vmatpush.msra.mxu0 %v905
    %1041 = vmatmul.f32.gmra.mxu0 %v824
    %v1042 = vpop.f32.mrf.mxu0
    %v1043 = vadd.f32 %v1023, %v1042
    %1044 = vdwg.mxu0
    %v1045 = vmax.f32 %v1043, 0.0
    %v1046 = vld [vmem:[%s11] sm:$0xff]
    %v1047 = vld [vmem:[%s11 + $0x8] sm:$0xff]
    %v1048 = vld [vmem:[%s11 + $0x10] sm:$0xff]
    %v1049 = vld [vmem:[%s11 + $0x18] sm:$0xff]
    %v1050 = vld [vmem:[%s13] sm:$0x1]
    %v1051 = vld [vmem:[%s15] sm:$0x1]
    %v1052 = vld [vmem:[%s17] sm:$0x1]
    %v1053 = vld [vmem:[%s19] sm:$0xff]
    %v1054 = vld [vmem:[%s19 + $0x8] sm:$0xff]
    %v1055 = vld [vmem:[%s19 + $0x10] sm:$0xff]
    %v1056 = vld [vmem:[%s19 + $0x18] sm:$0xff]
    %v1057 = vld [vmem:[%s19 + $0x20] sm:$0xff]
    %v1058 = vld [vmem:[%s19 + $0x28] sm:$0xff]
    %v1059 = vld [vmem:[%s19 + $0x30] sm:$0xff]
    %v1060 = vld [vmem:[%s19 + $0x38] sm:$0xff]
    %v1061 = vld [vmem:[%s21] sm:$0x1]
    %v1063 = vperm.slane %v1050, 0
    %v1066 = vsel %vm615, %v1045, 0
    %1068 = vmatpush.msra.mxu0 0.0
    %1069 = vmatpush.msra.mxu0 0.0
    %1070 = vmatpush.msra.mxu0 0.0
    %1071 = vmatpush.msra.mxu0 0.0
    %1072 = vmatpush.msra.mxu0 0.0
    %1073 = vmatpush.msra.mxu0 0.0
    %1074 = vmatpush.msra.mxu0 0.0
    %1075 = vmatpush.msra.mxu0 0.0
    %1076 = vmatpush.msra.mxu0 0.0
    %1077 = vmatpush.msra.mxu0 0.0
    %1078 = vmatpush.msra.mxu0 0.0
    %1079 = vmatpush.msra.mxu0 0.0
    %1080 = vmatpush.msra.mxu0 %v1049
    %1081 = vmatpush.msra.mxu0 %v1048
    %1082 = vmatpush.msra.mxu0 %v1047
    %1083 = vmatpush.msra.mxu0 %v1046
    %1084 = vmatmul.f32.gmra.mxu0 %v1066
    %v1085 = vpop.f32.mrf.mxu0
    %v1086 = vadd.f32 %v1063, %v1085
    %1087 = vdwg.mxu0
    %v1088 = vsel %vm739, %v1086, 0.0
    %v1089 = vrot.slane %v1088, 4
    %v1090 = vadd.f32 %v1088, %v1089
    %v1091 = vrot.slane %v1090, 2
    %v1092 = vadd.f32 %v1090, %v1091
    %v1093 = vrot.slane %v1092, 1
    %v1094 = vadd.f32 %v1092, %v1093
    %v1095 = vrcp.pop 8.0
    %v1096 = vmul.f32 8.0, %v1095
    %v1097 = vsub.f32 1.0, %v1096
    %v1098 = vmul.f32 %v1095, %v1097
    %v1099 = vadd.f32 %v1095, %v1098
    %vm1100 = vweird.f32 %v1095
    %v1101 = vsel %vm1100, %v1095, %v1099
    %v1102 = vmul.f32 %v1094, %v1101
    %v1103 = vsub.f32 %v1086, %v1102
    %v1104 = vmul.f32 %v1103, %v1103
    %v1105 = vsel %vm739, %v1104, 0.0
    %v1106 = vrot.slane %v1105, 4
    %v1107 = vadd.f32 %v1105, %v1106
    %v1108 = vrot.slane %v1107, 2
    %v1109 = vadd.f32 %v1107, %v1108
    %v1110 = vrot.slane %v1109, 1
    %v1111 = vadd.f32 %v1109, %v1110
    %v1112 = vmul.f32 %v1111, %v1101
    %v1113 = vadd.f32 %v1112, 1e-05
    %v1114 = vrsqrt.pop %v1113
    %v1115 = vmul.f32 %v1114, %v1113
    %v1116 = vmul.f32 %v1115, %v1114
    %v1117 = vmul.f32 0.5, %v1116
    %v1118 = vsub.f32 1.5, %v1117
    %v1119 = vmul.f32 %v1114, %v1118
    %vm1120 = vweird.f32 %v1113
    %vm1121 = vweird.f32 %v1114
    %vm1122 = vmor %vm1120, %vm1121
    %v1123 = vsel %vm1122, %v1114, %v1119
    %v1124 = vmul.f32 %v1103, %v1123
    %v1126 = vperm.slane %v1051, 0
    %v1128 = vmul.f32 %v1124, %v1126
    %v1130 = vperm.slane %v1052, 0
    %v1132 = vadd.f32 %v1128, %v1130
    %v1133 = vmax.f32 %v1132, 0.0
    %v1135 = vperm.slane %v1061, 0
    %v1138 = vsel %vm739, %v1133, 0
    %1140 = vmatpush.msra.mxu0 0.0
    %1141 = vmatpush.msra.mxu0 0.0
    %1142 = vmatpush.msra.mxu0 0.0
    %1143 = vmatpush.msra.mxu0 0.0
    %1144 = vmatpush.msra.mxu0 0.0
    %1145 = vmatpush.msra.mxu0 0.0
    %1146 = vmatpush.msra.mxu0 0.0
    %1147 = vmatpush.msra.mxu0 0.0
    %1148 = vmatpush.msra.mxu0 %v1060
    %1149 = vmatpush.msra.mxu0 %v1059
    %1150 = vmatpush.msra.mxu0 %v1058
    %1151 = vmatpush.msra.mxu0 %v1057
    %1152 = vmatpush.msra.mxu0 %v1056
    %1153 = vmatpush.msra.mxu0 %v1055
    %1154 = vmatpush.msra.mxu0 %v1054
    %1155 = vmatpush.msra.mxu0 %v1053
    %1156 = vmatmul.f32.gmra.mxu0 %v1138
    %v1157 = vpop.f32.mrf.mxu0
    %v1158 = vadd.f32 %v1135, %v1157
    %1159 = vdwg.mxu0
    %v1160 = vld [vmem:[%s39] sm:$0xff]
    %v1161 = vld [vmem:[%s39 + $0x8] sm:$0xff]
    %v1162 = vld [vmem:[%s41] sm:$0x1]
    %v1163 = vld [vmem:[%s43] sm:$0x1]
    %v1164 = vld [vmem:[%s45] sm:$0x1]
    %v1165 = vld [vmem:[%s47] sm:$0xff]
    %v1166 = vld [vmem:[%s47 + $0x8] sm:$0xff]
    %v1167 = vld [vmem:[%s47 + $0x10] sm:$0xff]
    %v1168 = vld [vmem:[%s47 + $0x18] sm:$0xff]
    %v1169 = vld [vmem:[%s47 + $0x20] sm:$0xff]
    %v1170 = vld [vmem:[%s47 + $0x28] sm:$0xff]
    %v1171 = vld [vmem:[%s47 + $0x30] sm:$0xff]
    %v1172 = vld [vmem:[%s47 + $0x38] sm:$0xff]
    %v1173 = vld [vmem:[%s49] sm:$0x1]
    %v1175 = vperm.slane %v1162, 0
    %v1178 = vsel %vm803, %v1158, 0
    %1180 = vmatpush.msra.mxu0 0.0
    %1181 = vmatpush.msra.mxu0 0.0
    %1182 = vmatpush.msra.mxu0 0.0
    %1183 = vmatpush.msra.mxu0 0.0
    %1184 = vmatpush.msra.mxu0 0.0
    %1185 = vmatpush.msra.mxu0 0.0
    %1186 = vmatpush.msra.mxu0 0.0
    %1187 = vmatpush.msra.mxu0 0.0
    %1188 = vmatpush.msra.mxu0 0.0
    %1189 = vmatpush.msra.mxu0 0.0
    %1190 = vmatpush.msra.mxu0 0.0
    %1191 = vmatpush.msra.mxu0 0.0
    %1192 = vmatpush.msra.mxu0 0.0
    %1193 = vmatpush.msra.mxu0 0.0
    %1194 = vmatpush.msra.mxu0 %v1161
    %1195 = vmatpush.msra.mxu0 %v1160
    %1196 = vmatmul.f32.gmra.mxu0 %v1178
    %v1197 = vpop.f32.mrf.mxu0
    %v1198 = vadd.f32 %v1175, %v1197
    %1199 = vdwg.mxu0
    %v1200 = vsel %vm739, %v1198, 0.0
    %v1201 = vrot.slane %v1200, 4
    %v1202 = vadd.f32 %v1200, %v1201
    %v1203 = vrot.slane %v1202, 2
    %v1204 = vadd.f32 %v1202, %v1203
    %v1205 = vrot.slane %v1204, 1
    %v1206 = vadd.f32 %v1204, %v1205
    %v1207 = vmul.f32 %v1206, %v1101
    %v1208 = vsub.f32 %v1198, %v1207
    %v1209 = vmul.f32 %v1208, %v1208
    %v1210 = vsel %vm739, %v1209, 0.0
    %v1211 = vrot.slane %v1210, 4
    %v1212 = vadd.f32 %v1210, %v1211
    %v1213 = vrot.slane %v1212, 2
    %v1214 = vadd.f32 %v1212, %v1213
    %v1215 = vrot.slane %v1214, 1
    %v1216 = vadd.f32 %v1214, %v1215
    %v1217 = vmul.f32 %v1216, %v1101
    %v1218 = vadd.f32 %v1217, 1e-05
    %v1219 = vrsqrt.pop %v1218
    %v1220 = vmul.f32 %v1219, %v1218
    %v1221 = vmul.f32 %v1220, %v1219
    %v1222 = vmul.f32 0.5, %v1221
    %v1223 = vsub.f32 1.5, %v1222
    %v1224 = vmul.f32 %v1219, %v1223
    %vm1225 = vweird.f32 %v1218
    %vm1226 = vweird.f32 %v1219
    %vm1227 = vmor %vm1225, %vm1226
    %v1228 = vsel %vm1227, %v1219, %v1224
    %v1229 = vmul.f32 %v1208, %v1228
    %v1231 = vperm.slane %v1163, 0
    %v1233 = vmul.f32 %v1229, %v1231
    %v1235 = vperm.slane %v1164, 0
    %v1237 = vadd.f32 %v1233, %v1235
    %v1238 = vmax.f32 %v1237, 0.0
    %v1240 = vperm.slane %v1173, 0
    %v1243 = vsel %vm739, %v1238, 0
    %1245 = vmatpush.msra.mxu0 0.0
    %1246 = vmatpush.msra.mxu0 0.0
    %1247 = vmatpush.msra.mxu0 0.0
    %1248 = vmatpush.msra.mxu0 0.0
    %1249 = vmatpush.msra.mxu0 0.0
    %1250 = vmatpush.msra.mxu0 0.0
    %1251 = vmatpush.msra.mxu0 0.0
    %1252 = vmatpush.msra.mxu0 0.0
    %1253 = vmatpush.msra.mxu0 %v1172
    %1254 = vmatpush.msra.mxu0 %v1171
    %1255 = vmatpush.msra.mxu0 %v1170
    %1256 = vmatpush.msra.mxu0 %v1169
    %1257 = vmatpush.msra.mxu0 %v1168
    %1258 = vmatpush.msra.mxu0 %v1167
    %1259 = vmatpush.msra.mxu0 %v1166
    %1260 = vmatpush.msra.mxu0 %v1165
    %1261 = vmatmul.f32.gmra.mxu0 %v1243
    %v1262 = vpop.f32.mrf.mxu0
    %v1263 = vadd.f32 %v1240, %v1262
    %1264 = vdwg.mxu0
    %v1265 = vmul.f32 %v1263, %v1263
    %v1266 = vsel %vm803, %v1265, 0.0
    %1267 = vadd.xlane.f32.xlu0 %v1266
    %v1268 = vpop.xlane.xlu0 %1267
    %v1269 = vmax.f32 %v1268, 1e-24
    %v1270 = vrsqrt.pop %v1269
    %v1271 = vmul.f32 %v1270, %v1269
    %v1272 = vmul.f32 %v1271, %v1270
    %v1273 = vmul.f32 0.5, %v1272
    %v1274 = vsub.f32 1.5, %v1273
    %v1275 = vmul.f32 %v1270, %v1274
    %vm1276 = vweird.f32 %v1269
    %vm1277 = vweird.f32 %v1270
    %vm1278 = vmor %vm1276, %vm1277
    %v1279 = vsel %vm1278, %v1270, %v1275
    %v1280 = vmul.f32 %v1263, %v1279
    %v1281 = vld [vmem:[%s3] sm:$0xff]
    %v1282 = vld [vmem:[%s3 + $0x8] sm:$0xff]
    %v1283 = vld [vmem:[%s3 + $0x10] sm:$0xff]
    %v1284 = vld [vmem:[%s3 + $0x18] sm:$0xff]
    %v1285 = vld [vmem:[%s3 + $0x20] sm:$0xff]
    %v1286 = vld [vmem:[%s3 + $0x28] sm:$0xff]
    %v1288 = vperm.slane %v716, 0
    %1290 = vmatpush.msra.mxu0 %v534
    %1291 = vmatpush.msra.mxu0 %v533
    %1292 = vmatpush.msra.mxu0 %v532
    %1293 = vmatpush.msra.mxu0 %v531
    %1294 = vmatpush.msra.mxu0 %v530
    %1295 = vmatpush.msra.mxu0 %v529
    %1296 = vmatpush.msra.mxu0 %v528
    %1297 = vmatpush.msra.mxu0 %v527
    %1298 = vmatpush.msra.mxu0 %v526
    %1299 = vmatpush.msra.mxu0 %v525
    %1300 = vmatpush.msra.mxu0 %v524
    %1301 = vmatpush.msra.mxu0 %v523
    %1302 = vmatpush.msra.mxu0 %v522
    %1303 = vmatpush.msra.mxu0 %v521
    %1304 = vmatpush.msra.mxu0 %v520
    %1305 = vmatpush.msra.mxu0 %v519
    %1306 = vmatmul.f32.gmra.mxu0 %v1281
    %v1307 = vpop.f32.mrf.mxu0
    %v1308 = vadd.f32 %v1288, %v1307
    %1309 = vdwg.mxu0
    %1310 = vmatpush.msra.mxu0 %v550
    %1311 = vmatpush.msra.mxu0 %v549
    %1312 = vmatpush.msra.mxu0 %v548
    %1313 = vmatpush.msra.mxu0 %v547
    %1314 = vmatpush.msra.mxu0 %v546
    %1315 = vmatpush.msra.mxu0 %v545
    %1316 = vmatpush.msra.mxu0 %v544
    %1317 = vmatpush.msra.mxu0 %v543
    %1318 = vmatpush.msra.mxu0 %v542
    %1319 = vmatpush.msra.mxu0 %v541
    %1320 = vmatpush.msra.mxu0 %v540
    %1321 = vmatpush.msra.mxu0 %v539
    %1322 = vmatpush.msra.mxu0 %v538
    %1323 = vmatpush.msra.mxu0 %v537
    %1324 = vmatpush.msra.mxu0 %v536
    %1325 = vmatpush.msra.mxu0 %v535
    %1326 = vmatmul.f32.gmra.mxu0 %v1282
    %v1327 = vpop.f32.mrf.mxu0
    %v1328 = vadd.f32 %v1308, %v1327
    %1329 = vdwg.mxu0
    %1330 = vmatpush.msra.mxu0 %v566
    %1331 = vmatpush.msra.mxu0 %v565
    %1332 = vmatpush.msra.mxu0 %v564
    %1333 = vmatpush.msra.mxu0 %v563
    %1334 = vmatpush.msra.mxu0 %v562
    %1335 = vmatpush.msra.mxu0 %v561
    %1336 = vmatpush.msra.mxu0 %v560
    %1337 = vmatpush.msra.mxu0 %v559
    %1338 = vmatpush.msra.mxu0 %v558
    %1339 = vmatpush.msra.mxu0 %v557
    %1340 = vmatpush.msra.mxu0 %v556
    %1341 = vmatpush.msra.mxu0 %v555
    %1342 = vmatpush.msra.mxu0 %v554
    %1343 = vmatpush.msra.mxu0 %v553
    %1344 = vmatpush.msra.mxu0 %v552
    %1345 = vmatpush.msra.mxu0 %v551
    %1346 = vmatmul.f32.gmra.mxu0 %v1283
    %v1347 = vpop.f32.mrf.mxu0
    %v1348 = vadd.f32 %v1328, %v1347
    %1349 = vdwg.mxu0
    %1350 = vmatpush.msra.mxu0 %v582
    %1351 = vmatpush.msra.mxu0 %v581
    %1352 = vmatpush.msra.mxu0 %v580
    %1353 = vmatpush.msra.mxu0 %v579
    %1354 = vmatpush.msra.mxu0 %v578
    %1355 = vmatpush.msra.mxu0 %v577
    %1356 = vmatpush.msra.mxu0 %v576
    %1357 = vmatpush.msra.mxu0 %v575
    %1358 = vmatpush.msra.mxu0 %v574
    %1359 = vmatpush.msra.mxu0 %v573
    %1360 = vmatpush.msra.mxu0 %v572
    %1361 = vmatpush.msra.mxu0 %v571
    %1362 = vmatpush.msra.mxu0 %v570
    %1363 = vmatpush.msra.mxu0 %v569
    %1364 = vmatpush.msra.mxu0 %v568
    %1365 = vmatpush.msra.mxu0 %v567
    %1366 = vmatmul.f32.gmra.mxu0 %v1284
    %v1367 = vpop.f32.mrf.mxu0
    %v1368 = vadd.f32 %v1348, %v1367
    %1369 = vdwg.mxu0
    %1370 = vmatpush.msra.mxu0 %v598
    %1371 = vmatpush.msra.mxu0 %v597
    %1372 = vmatpush.msra.mxu0 %v596
    %1373 = vmatpush.msra.mxu0 %v595
    %1374 = vmatpush.msra.mxu0 %v594
    %1375 = vmatpush.msra.mxu0 %v593
    %1376 = vmatpush.msra.mxu0 %v592
    %1377 = vmatpush.msra.mxu0 %v591
    %1378 = vmatpush.msra.mxu0 %v590
    %1379 = vmatpush.msra.mxu0 %v589
    %1380 = vmatpush.msra.mxu0 %v588
    %1381 = vmatpush.msra.mxu0 %v587
    %1382 = vmatpush.msra.mxu0 %v586
    %1383 = vmatpush.msra.mxu0 %v585
    %1384 = vmatpush.msra.mxu0 %v584
    %1385 = vmatpush.msra.mxu0 %v583
    %1386 = vmatmul.f32.gmra.mxu0 %v1285
    %v1387 = vpop.f32.mrf.mxu0
    %v1388 = vadd.f32 %v1368, %v1387
    %1389 = vdwg.mxu0
    %1390 = vmatpush.msra.mxu0 %v614
    %1391 = vmatpush.msra.mxu0 %v613
    %1392 = vmatpush.msra.mxu0 %v612
    %1393 = vmatpush.msra.mxu0 %v611
    %1394 = vmatpush.msra.mxu0 %v610
    %1395 = vmatpush.msra.mxu0 %v609
    %1396 = vmatpush.msra.mxu0 %v608
    %1397 = vmatpush.msra.mxu0 %v607
    %1398 = vmatpush.msra.mxu0 %v606
    %1399 = vmatpush.msra.mxu0 %v605
    %1400 = vmatpush.msra.mxu0 %v604
    %1401 = vmatpush.msra.mxu0 %v603
    %1402 = vmatpush.msra.mxu0 %v602
    %1403 = vmatpush.msra.mxu0 %v601
    %1404 = vmatpush.msra.mxu0 %v600
    %1405 = vmatpush.msra.mxu0 %v599
    %1406 = vmatmul.f32.gmra.mxu0 %v1286
    %v1407 = vpop.f32.mrf.mxu0
    %v1408 = vadd.f32 %v1388, %v1407
    %1409 = vdwg.mxu0
    %v1410 = vmax.f32 %v1408, 0.0
    %v1412 = vperm.slane %v748, 0
    %v1415 = vsel %vm615, %v1410, 0
    %1417 = vmatpush.msra.mxu0 0.0
    %1418 = vmatpush.msra.mxu0 0.0
    %1419 = vmatpush.msra.mxu0 0.0
    %1420 = vmatpush.msra.mxu0 0.0
    %1421 = vmatpush.msra.mxu0 0.0
    %1422 = vmatpush.msra.mxu0 0.0
    %1423 = vmatpush.msra.mxu0 0.0
    %1424 = vmatpush.msra.mxu0 0.0
    %1425 = vmatpush.msra.mxu0 0.0
    %1426 = vmatpush.msra.mxu0 0.0
    %1427 = vmatpush.msra.mxu0 0.0
    %1428 = vmatpush.msra.mxu0 0.0
    %1429 = vmatpush.msra.mxu0 %v738
    %1430 = vmatpush.msra.mxu0 %v737
    %1431 = vmatpush.msra.mxu0 %v736
    %1432 = vmatpush.msra.mxu0 %v735
    %1433 = vmatmul.f32.gmra.mxu0 %v1415
    %v1434 = vpop.f32.mrf.mxu0
    %v1435 = vadd.f32 %v1412, %v1434
    %1436 = vdwg.mxu0
    %v1437 = vsel %vm739, %v1435, 0.0
    %v1438 = vrot.slane %v1437, 4
    %v1439 = vadd.f32 %v1437, %v1438
    %v1440 = vrot.slane %v1439, 2
    %v1441 = vadd.f32 %v1439, %v1440
    %v1442 = vrot.slane %v1441, 1
    %v1443 = vadd.f32 %v1441, %v1442
    %v1444 = vmul.f32 %v1443, %v1101
    %v1445 = vsub.f32 %v1435, %v1444
    %v1446 = vmul.f32 %v1445, %v1445
    %v1447 = vsel %vm739, %v1446, 0.0
    %v1448 = vrot.slane %v1447, 4
    %v1449 = vadd.f32 %v1447, %v1448
    %v1450 = vrot.slane %v1449, 2
    %v1451 = vadd.f32 %v1449, %v1450
    %v1452 = vrot.slane %v1451, 1
    %v1453 = vadd.f32 %v1451, %v1452
    %v1454 = vmul.f32 %v1453, %v1101
    %v1455 = vadd.f32 %v1454, 1e-05
    %v1456 = vrsqrt.pop %v1455
    %v1457 = vmul.f32 %v1456, %v1455
    %v1458 = vmul.f32 %v1457, %v1456
    %v1459 = vmul.f32 0.5, %v1458
    %v1460 = vsub.f32 1.5, %v1459
    %v1461 = vmul.f32 %v1456, %v1460
    %vm1462 = vweird.f32 %v1455
    %vm1463 = vweird.f32 %v1456
    %vm1464 = vmor %vm1462, %vm1463
    %v1465 = vsel %vm1464, %v1456, %v1461
    %v1466 = vmul.f32 %v1445, %v1465
    %v1468 = vperm.slane %v755, 0
    %v1470 = vmul.f32 %v1466, %v1468
    %v1472 = vperm.slane %v761, 0
    %v1474 = vadd.f32 %v1470, %v1472
    %v1475 = vmax.f32 %v1474, 0.0
    %v1477 = vperm.slane %v816, 0
    %v1480 = vsel %vm739, %v1475, 0
    %1482 = vmatpush.msra.mxu0 0.0
    %1483 = vmatpush.msra.mxu0 0.0
    %1484 = vmatpush.msra.mxu0 0.0
    %1485 = vmatpush.msra.mxu0 0.0
    %1486 = vmatpush.msra.mxu0 0.0
    %1487 = vmatpush.msra.mxu0 0.0
    %1488 = vmatpush.msra.mxu0 0.0
    %1489 = vmatpush.msra.mxu0 0.0
    %1490 = vmatpush.msra.mxu0 %v802
    %1491 = vmatpush.msra.mxu0 %v801
    %1492 = vmatpush.msra.mxu0 %v800
    %1493 = vmatpush.msra.mxu0 %v799
    %1494 = vmatpush.msra.mxu0 %v798
    %1495 = vmatpush.msra.mxu0 %v797
    %1496 = vmatpush.msra.mxu0 %v796
    %1497 = vmatpush.msra.mxu0 %v795
    %1498 = vmatmul.f32.gmra.mxu0 %v1480
    %v1499 = vpop.f32.mrf.mxu0
    %v1500 = vadd.f32 %v1477, %v1499
    %1501 = vdwg.mxu0
    %v1502 = vld [vmem:[%s5] sm:$0xff]
    %v1503 = vmul.f32 %v1500, %v1500
    %v1504 = vsel %vm803, %v1503, 0.0
    %1505 = vadd.xlane.f32.xlu0 %v1504
    %v1506 = vpop.xlane.xlu0 %1505
    %v1507 = vmax.f32 %v1506, 1e-24
    %v1508 = vrsqrt.pop %v1507
    %v1509 = vmul.f32 %v1508, %v1507
    %v1510 = vmul.f32 %v1509, %v1508
    %v1511 = vmul.f32 0.5, %v1510
    %v1512 = vsub.f32 1.5, %v1511
    %v1513 = vmul.f32 %v1508, %v1512
    %vm1514 = vweird.f32 %v1507
    %vm1515 = vweird.f32 %v1508
    %vm1516 = vmor %vm1514, %vm1515
    %v1517 = vsel %vm1516, %v1508, %v1513
    %v1518 = vmul.f32 %v1500, %v1517
    %vm1519 = vcmask 64512
    %v1521 = vsel %vm1519, %v1502, 0
    %1523 = vmatpush.msra.mxu0 0.0
    %1524 = vmatpush.msra.mxu0 0.0
    %1525 = vmatpush.msra.mxu0 0.0
    %1526 = vmatpush.msra.mxu0 0.0
    %1527 = vmatpush.msra.mxu0 0.0
    %1528 = vmatpush.msra.mxu0 0.0
    %1529 = vmatpush.msra.mxu0 0.0
    %1530 = vmatpush.msra.mxu0 0.0
    %1531 = vmatpush.msra.mxu0 0.0
    %1532 = vmatpush.msra.mxu0 0.0
    %1533 = vmatpush.msra.mxu0 0.0
    %1534 = vmatpush.msra.mxu0 0.0
    %1535 = vmatpush.msra.mxu0 0.0
    %1536 = vmatpush.msra.mxu0 0.0
    %1537 = vmatpush.msra.mxu0 0.0
    %1538 = vmatpush.msra.mxu0 %v1518
    %1539 = vmatmul.f32.gmra.mxu0 %v1521
    %v1540 = vpop.f32.mrf.mxu0
    %v1541 = vadd.f32 0.0, %v1540
    %1542 = vdwg.mxu0
    %s1543 = sld [smem:[#allocation2]]
    %v1544 = vld [vmem:[%s51] sm:$0xff]
    %v1545 = vld [vmem:[%s51 + $0x8] sm:$0xff]
    %v1546 = vld [vmem:[%s51 + $0x10] sm:$0xff]
    %v1547 = vld [vmem:[%s51 + $0x18] sm:$0xff]
    %v1548 = vld [vmem:[%s51 + $0x20] sm:$0xff]
    %v1549 = vld [vmem:[%s51 + $0x28] sm:$0xff]
    %v1550 = vld [vmem:[%s51 + $0x30] sm:$0xff]
    %v1551 = vld [vmem:[%s51 + $0x38] sm:$0xff]
    %1552 = vst.msk [vmem:[%s57] sm:$0xff] %vm803, %v1544
    %1553 = vst.msk [vmem:[%s57 + $0x8] sm:$0xff] %vm803, %v1545
    %1554 = vst.msk [vmem:[%s57 + $0x10] sm:$0xff] %vm803, %v1546
    %1555 = vst.msk [vmem:[%s57 + $0x18] sm:$0xff] %vm803, %v1547
    %1556 = vst.msk [vmem:[%s57 + $0x20] sm:$0xff] %vm803, %v1548
    %1557 = vst.msk [vmem:[%s57 + $0x28] sm:$0xff] %vm803, %v1549
    %1558 = vst.msk [vmem:[%s57 + $0x30] sm:$0xff] %vm803, %v1550
    %1559 = vst.msk [vmem:[%s57 + $0x38] sm:$0xff] %vm803, %v1551
    %s1560 = scalar_lea.vmem %s57, %s1543
    %1561 = vst.msk [vmem:[%s1560] sm:$0xff] %vm803, %v1541
    %v1562 = vld [vmem:[%s57] sm:$0xff]
    %v1563 = vld [vmem:[%s57 + $0x8] sm:$0xff]
    %v1564 = vld [vmem:[%s57 + $0x10] sm:$0xff]
    %v1565 = vld [vmem:[%s57 + $0x18] sm:$0xff]
    %v1566 = vld [vmem:[%s57 + $0x20] sm:$0xff]
    %v1567 = vld [vmem:[%s57 + $0x28] sm:$0xff]
    %v1568 = vld [vmem:[%s57 + $0x30] sm:$0xff]
    %v1569 = vld [vmem:[%s57 + $0x38] sm:$0xff]
    %v1571 = vsel %vm803, %v1541, 0
    %v1574 = vsel %vm803, %v1562, 0
    %v1577 = vsel %vm803, %v1563, 0
    %v1580 = vsel %vm803, %v1564, 0
    %v1583 = vsel %vm803, %v1565, 0
    %v1586 = vsel %vm803, %v1566, 0
    %v1589 = vsel %vm803, %v1567, 0
    %v1592 = vsel %vm803, %v1568, 0
    %v1595 = vsel %vm803, %v1569, 0
    %1597 = vmatpush.xpose.msra.mxu0 0.0
    %1598 = vmatpush.xpose.msra.mxu0 0.0
    %1599 = vmatpush.xpose.msra.mxu0 0.0
    %1600 = vmatpush.xpose.msra.mxu0 0.0
    %1601 = vmatpush.xpose.msra.mxu0 0.0
    %1602 = vmatpush.xpose.msra.mxu0 0.0
    %1603 = vmatpush.xpose.msra.mxu0 0.0
    %1604 = vmatpush.xpose.msra.mxu0 0.0
    %1605 = vmatpush.xpose.msra.mxu0 %v1595
    %1606 = vmatpush.xpose.msra.mxu0 %v1592
    %1607 = vmatpush.xpose.msra.mxu0 %v1589
    %1608 = vmatpush.xpose.msra.mxu0 %v1586
    %1609 = vmatpush.xpose.msra.mxu0 %v1583
    %1610 = vmatpush.xpose.msra.mxu0 %v1580
    %1611 = vmatpush.xpose.msra.mxu0 %v1577
    %1612 = vmatpush.xpose.msra.mxu0 %v1574
    %1613 = vmatmul.f32.gmra.mxu0 %v1571
    %v1614 = vpop.f32.mrf.mxu0
    %v1615 = vadd.f32 0.0, %v1614
    %1616 = vdwg.mxu0
    %v1617 = vmul.f32 %v1615, 2.0
    %v1618 = vsub.f32 2.0, %v1617
    %v1620 = vsel %vm803, %v1280, 0
    %1622 = vmatpush.xpose.msra.mxu0 0.0
    %1623 = vmatpush.xpose.msra.mxu0 0.0
    %1624 = vmatpush.xpose.msra.mxu0 0.0
    %1625 = vmatpush.xpose.msra.mxu0 0.0
    %1626 = vmatpush.xpose.msra.mxu0 0.0
    %1627 = vmatpush.xpose.msra.mxu0 0.0
    %1628 = vmatpush.xpose.msra.mxu0 0.0
    %1629 = vmatpush.xpose.msra.mxu0 0.0
    %1630 = vmatpush.xpose.msra.mxu0 %v1595
    %1631 = vmatpush.xpose.msra.mxu0 %v1592
    %1632 = vmatpush.xpose.msra.mxu0 %v1589
    %1633 = vmatpush.xpose.msra.mxu0 %v1586
    %1634 = vmatpush.xpose.msra.mxu0 %v1583
    %1635 = vmatpush.xpose.msra.mxu0 %v1580
    %1636 = vmatpush.xpose.msra.mxu0 %v1577
    %1637 = vmatpush.xpose.msra.mxu0 %v1574
    %1638 = vmatmul.f32.gmra.mxu0 %v1620
    %v1639 = vpop.f32.mrf.mxu0
    %v1640 = vadd.f32 0.0, %v1639
    %1641 = vdwg.mxu0
    %v1642 = vmul.f32 %v1640, 2.0
    %v1643 = vsub.f32 2.0, %v1642
    %v1644 = vlaneseq
    %v1645 = vand.u32 %v1644, 127
    %v1646 = vsel %vm739, %v1618, inf
    %1647 = vmin.xlane.f32.xlu0 %v1646
    %v1648 = vpop.xlane.xlu0 %1647
    %vm1649 = vcmp.eq.f32.partialorder %v1618, %v1648
    %v1650 = vsel %vm1649, %v1645, 64
    %v1651 = vsel %vm739, %v1650, 2147483647
    %v1652 = vand.u32 %v1651, 65535
    %v1653 = vshra.s32 %v1651, 16
    %v1654 = vcvt.s32.f32 %v1652
    %v1655 = vcvt.s32.f32 %v1653
    %1656 = vmin.xlane.f32.xlu0 %v1655
    %v1657 = vpop.xlane.xlu0 %1656
    %vm1658 = vcmp.eq.f32.partialorder %v1655, %v1657
    %v1659 = vsel %vm1658, %v1654, inf
    %1660 = vmin.xlane.f32.xlu0 %v1659
    %v1661 = vpop.xlane.xlu0 %1660
    %v1662 = vcvt.f32.s32 %v1661
    %v1663 = vcvt.f32.s32 %v1657
    %v1664 = vshll.u32 %v1663, 16
    %v1665 = vadd.s32 %v1664, %v1662
    %vm1666 = vcmp.eq.s32.totalorder %v1645, %v1665
    %v1667 = vsel %vm1666, %v1643, 0.0
    %v1668 = vsel %vm739, %v1667, 0.0
    %1669 = vadd.xlane.f32.xlu0 %v1668
    %v1670 = vpop.xlane.xlu0 %1669
    %v1671 = vadd.f32 %v1670, 0.0
    %v1672 = vsel %vm1666, 1e+30, %v1618
    %v1673 = vsel %vm739, %v1672, inf
    %1674 = vmin.xlane.f32.xlu0 %v1673
    %v1675 = vpop.xlane.xlu0 %1674
    %vm1676 = vcmp.eq.f32.partialorder %v1672, %v1675
    %v1677 = vsel %vm1676, %v1645, 64
    %v1678 = vsel %vm739, %v1677, 2147483647
    %v1679 = vand.u32 %v1678, 65535
    %v1680 = vshra.s32 %v1678, 16
    %v1681 = vcvt.s32.f32 %v1679
    %v1682 = vcvt.s32.f32 %v1680
    %1683 = vmin.xlane.f32.xlu0 %v1682
    %v1684 = vpop.xlane.xlu0 %1683
    %vm1685 = vcmp.eq.f32.partialorder %v1682, %v1684
    %v1686 = vsel %vm1685, %v1681, inf
    %1687 = vmin.xlane.f32.xlu0 %v1686
    %v1688 = vpop.xlane.xlu0 %1687
    %v1689 = vcvt.f32.s32 %v1688
    %v1690 = vcvt.f32.s32 %v1684
    %v1691 = vshll.u32 %v1690, 16
    %v1692 = vadd.s32 %v1691, %v1689
    %vm1693 = vcmp.eq.s32.totalorder %v1645, %v1692
    %v1694 = vsel %vm1693, %v1643, 0.0
    %v1695 = vsel %vm739, %v1694, 0.0
    %1696 = vadd.xlane.f32.xlu0 %v1695
    %v1697 = vpop.xlane.xlu0 %1696
    %v1698 = vadd.f32 %v1671, %v1697
    %v1699 = vsel %vm1693, 1e+30, %v1672
    %v1700 = vsel %vm739, %v1699, inf
    %1701 = vmin.xlane.f32.xlu0 %v1700
    %v1702 = vpop.xlane.xlu0 %1701
    %vm1703 = vcmp.eq.f32.partialorder %v1699, %v1702
    %v1704 = vsel %vm1703, %v1645, 64
    %v1705 = vsel %vm739, %v1704, 2147483647
    %v1706 = vand.u32 %v1705, 65535
    %v1707 = vshra.s32 %v1705, 16
    %v1708 = vcvt.s32.f32 %v1706
    %v1709 = vcvt.s32.f32 %v1707
    %1710 = vmin.xlane.f32.xlu0 %v1709
    %v1711 = vpop.xlane.xlu0 %1710
    %vm1712 = vcmp.eq.f32.partialorder %v1709, %v1711
    %v1713 = vsel %vm1712, %v1708, inf
    %1714 = vmin.xlane.f32.xlu0 %v1713
    %v1715 = vpop.xlane.xlu0 %1714
    %v1716 = vcvt.f32.s32 %v1715
    %v1717 = vcvt.f32.s32 %v1711
    %v1718 = vshll.u32 %v1717, 16
    %v1719 = vadd.s32 %v1718, %v1716
    %vm1720 = vcmp.eq.s32.totalorder %v1645, %v1719
    %v1721 = vsel %vm1720, %v1643, 0.0
    %v1722 = vsel %vm739, %v1721, 0.0
    %1723 = vadd.xlane.f32.xlu0 %v1722
    %v1724 = vpop.xlane.xlu0 %1723
    %v1725 = vadd.f32 %v1698, %v1724
    %v1726 = vsel %vm1720, 1e+30, %v1699
    %v1727 = vsel %vm739, %v1726, inf
    %1728 = vmin.xlane.f32.xlu0 %v1727
    %v1729 = vpop.xlane.xlu0 %1728
    %vm1730 = vcmp.eq.f32.partialorder %v1726, %v1729
    %v1731 = vsel %vm1730, %v1645, 64
    %v1732 = vsel %vm739, %v1731, 2147483647
    %v1733 = vand.u32 %v1732, 65535
    %v1734 = vshra.s32 %v1732, 16
    %v1735 = vcvt.s32.f32 %v1733
    %v1736 = vcvt.s32.f32 %v1734
    %1737 = vmin.xlane.f32.xlu0 %v1736
    %v1738 = vpop.xlane.xlu0 %1737
    %vm1739 = vcmp.eq.f32.partialorder %v1736, %v1738
    %v1740 = vsel %vm1739, %v1735, inf
    %1741 = vmin.xlane.f32.xlu0 %v1740
    %v1742 = vpop.xlane.xlu0 %1741
    %v1743 = vcvt.f32.s32 %v1742
    %v1744 = vcvt.f32.s32 %v1738
    %v1745 = vshll.u32 %v1744, 16
    %v1746 = vadd.s32 %v1745, %v1743
    %vm1747 = vcmp.eq.s32.totalorder %v1645, %v1746
    %v1748 = vsel %vm1747, %v1643, 0.0
    %v1749 = vsel %vm739, %v1748, 0.0
    %1750 = vadd.xlane.f32.xlu0 %v1749
    %v1751 = vpop.xlane.xlu0 %1750
    %v1752 = vadd.f32 %v1725, %v1751
    %v1753 = vsel %vm1747, 1e+30, %v1726
    %v1754 = vsel %vm739, %v1753, inf
    %1755 = vmin.xlane.f32.xlu0 %v1754
    %v1756 = vpop.xlane.xlu0 %1755
    %vm1757 = vcmp.eq.f32.partialorder %v1753, %v1756
    %v1758 = vsel %vm1757, %v1645, 64
    %v1759 = vsel %vm739, %v1758, 2147483647
    %v1760 = vand.u32 %v1759, 65535
    %v1761 = vshra.s32 %v1759, 16
    %v1762 = vcvt.s32.f32 %v1760
    %v1763 = vcvt.s32.f32 %v1761
    %1764 = vmin.xlane.f32.xlu0 %v1763
    %v1765 = vpop.xlane.xlu0 %1764
    %vm1766 = vcmp.eq.f32.partialorder %v1763, %v1765
    %v1767 = vsel %vm1766, %v1762, inf
    %1768 = vmin.xlane.f32.xlu0 %v1767
    %v1769 = vpop.xlane.xlu0 %1768
    %v1770 = vcvt.f32.s32 %v1769
    %v1771 = vcvt.f32.s32 %v1765
    %v1772 = vshll.u32 %v1771, 16
    %v1773 = vadd.s32 %v1772, %v1770
    %vm1774 = vcmp.eq.s32.totalorder %v1645, %v1773
    %v1775 = vsel %vm1774, %v1643, 0.0
    %v1776 = vsel %vm739, %v1775, 0.0
    %1777 = vadd.xlane.f32.xlu0 %v1776
    %v1778 = vpop.xlane.xlu0 %1777
    %v1779 = vadd.f32 %v1752, %v1778
    %vm1780 = vcmask 7168
    %v1781 = vsel %vm1780, %v1779, 0.0
    %1782 = vadd.xlane.f32.xlu0 %v1781
    %v1783 = vpop.xlane.xlu0 %1782
    %v1784 = vrot.slane %v1783, 4
    %v1785 = vadd.f32 %v1783, %v1784
    %v1786 = vrot.slane %v1785, 2
    %v1787 = vadd.f32 %v1785, %v1786
    %v1788 = vrot.slane %v1787, 1
    %v1789 = vadd.f32 %v1787, %v1788
    %s1790 = vtos %v1789
    %v1791 = vstv %s1790
    %v1792 = vrcp.pop 40.0
    %v1793 = vmul.f32 40.0, %v1792
    %v1794 = vsub.f32 1.0, %v1793
    %v1795 = vmul.f32 %v1792, %v1794
    %v1796 = vadd.f32 %v1792, %v1795
    %vm1797 = vweird.f32 %v1792
    %v1798 = vsel %vm1797, %v1792, %v1796
    %v1799 = vmul.f32 %v1791, %v1798
    %vm1800 = vcmask 0
    %1801 = vst.msk [vmem:[#allocation3] sm:$0x1] %vm1800, %v1799
    // Predicated region
    $region110: #{mean_shift_forward.1} parent=1 // pred_check
      _
    $region111: #{mean_shift_forward.1} parent=1 // pred_check_branch
      %1803 = sbr.rel (0) target = $region113
    $region112: #{mean_shift_forward.1} parent=1 // pred_region
      %1805 = vsyncadd [#allocation4], 0
      %s1807 = sshll.u32 [#allocation3], 4
      %s1808 = int_to_ptr.vmem [resolvable:$true] %s1807
      %s1809 = sshll.u32 %s55, 4
      %s1810 = int_to_ptr.hbm [resolvable:$true] %s1809
      %1812 = dma.vmem_to_hbm [thread:$0]  %s1808, 16, %s1810, [#allocation4]
    $region113: #{mean_shift_forward.1} parent=1 // pred_fallthru
      _
    // Predicated region
    $region114: #{mean_shift_forward.1} parent=1 // pred_check
      _
    $region115: #{mean_shift_forward.1} parent=1 // pred_check_branch
      %1814 = sbr.rel (0) target = $region117
    $region116: #{mean_shift_forward.1} parent=1 // pred_region
      _
    $region117: #{mean_shift_forward.1} parent=1 // pred_fallthru
      _
    // Predicated region
    $region118: #{mean_shift_forward.1} parent=1 // pred_check
      _
    $region119: #{mean_shift_forward.1} parent=1 // pred_check_branch
      %1816 = sbr.rel (0) target = $region121
    $region120: #{mean_shift_forward.1} parent=1 // pred_region
      _
    $region121: #{mean_shift_forward.1} parent=1 // pred_fallthru
      _
    // Predicated region
    $region122: #{mean_shift_forward.1} parent=1 // pred_check
      _
    $region123: #{mean_shift_forward.1} parent=1 // pred_check_branch
      %1818 = sbr.rel (0) target = $region125
    $region124: #{mean_shift_forward.1} parent=1 // pred_region
      _
    $region125: #{mean_shift_forward.1} parent=1 // pred_fallthru
      _
    // Predicated region
    $region126: #{mean_shift_forward.1} parent=1 // pred_check
      _
    $region127: #{mean_shift_forward.1} parent=1 // pred_check_branch
      %1820 = sbr.rel (0) target = $region129
    $region128: #{mean_shift_forward.1} parent=1 // pred_region
      _
    $region129: #{mean_shift_forward.1} parent=1 // pred_fallthru
      _
    // Predicated region
    $region130: #{mean_shift_forward.1} parent=1 // pred_check
      _
    $region131: #{mean_shift_forward.1} parent=1 // pred_check_branch
      %1822 = sbr.rel (0) target = $region133
    $region132: #{mean_shift_forward.1} parent=1 // pred_region
      _
    $region133: #{mean_shift_forward.1} parent=1 // pred_fallthru
      _
    // Predicated region
    $region134: #{mean_shift_forward.1} parent=1 // pred_check
      _
    $region135: #{mean_shift_forward.1} parent=1 // pred_check_branch
      %1824 = sbr.rel (0) target = $region137
    $region136: #{mean_shift_forward.1} parent=1 // pred_region
      _
    $region137: #{mean_shift_forward.1} parent=1 // pred_fallthru
      _
    // Predicated region
    $region138: #{mean_shift_forward.1} parent=1 // pred_check
      _
    $region139: #{mean_shift_forward.1} parent=1 // pred_check_branch
      %1826 = sbr.rel (0) target = $region141
    $region140: #{mean_shift_forward.1} parent=1 // pred_region
      _
    $region141: #{mean_shift_forward.1} parent=1 // pred_fallthru
      _
    // Predicated region
    $region142: #{mean_shift_forward.1} parent=1 // pred_check
      _
    $region143: #{mean_shift_forward.1} parent=1 // pred_check_branch
      %1828 = sbr.rel (0) target = $region145
    $region144: #{mean_shift_forward.1} parent=1 // pred_region
      _
    $region145: #{mean_shift_forward.1} parent=1 // pred_fallthru
      _
    // Predicated region
    $region146: #{mean_shift_forward.1} parent=1 // pred_check
      _
    $region147: #{mean_shift_forward.1} parent=1 // pred_check_branch
      %1830 = sbr.rel (0) target = $region149
    $region148: #{mean_shift_forward.1} parent=1 // pred_region
      _
    $region149: #{mean_shift_forward.1} parent=1 // pred_fallthru
      _
    // Predicated region
    $region150: #{mean_shift_forward.1} parent=1 // pred_check
      _
    $region151: #{mean_shift_forward.1} parent=1 // pred_check_branch
      %1832 = sbr.rel (0) target = $region153
    $region152: #{mean_shift_forward.1} parent=1 // pred_region
      %1834 = dma.done [#allocation4], 16
    $region153: #{mean_shift_forward.1} parent=1 // pred_fallthru
      _
    // Predicated region
    $region154: #{mean_shift_forward.1} parent=1 // pred_check
      _
    $region155: #{mean_shift_forward.1} parent=1 // pred_check_branch
      %1836 = sbr.rel (0) target = $region157
    $region156: #{mean_shift_forward.1} parent=1 // pred_region
      _
    $region157: #{mean_shift_forward.1} parent=1 // pred_fallthru
      _
    // Predicated region
    $region158: #{mean_shift_forward.1} parent=1 // pred_check
      _
    $region159: #{mean_shift_forward.1} parent=1 // pred_check_branch
      %1838 = sbr.rel (0) target = $region161
    $region160: #{mean_shift_forward.1} parent=1 // pred_region
      _
    $region161: #{mean_shift_forward.1} parent=1 // pred_fallthru
      _
    // Predicated region
    $region162: #{mean_shift_forward.1} parent=1 // pred_check
      _
    $region163: #{mean_shift_forward.1} parent=1 // pred_check_branch
      %1840 = sbr.rel (0) target = $region165
    $region164: #{mean_shift_forward.1} parent=1 // pred_region
      _
    $region165: #{mean_shift_forward.1} parent=1 // pred_fallthru
      _
    // Predicated region
    $region166: #{mean_shift_forward.1} parent=1 // pred_check
      _
    $region167: #{mean_shift_forward.1} parent=1 // pred_check_branch
      %1842 = sbr.rel (0) target = $region169
    $region168: #{mean_shift_forward.1} parent=1 // pred_region
      _
    $region169: #{mean_shift_forward.1} parent=1 // pred_fallthru
      _
    // Predicated region
    $region170: #{mean_shift_forward.1} parent=1 // pred_check
      _
    $region171: #{mean_shift_forward.1} parent=1 // pred_check_branch
      %1844 = sbr.rel (0) target = $region173
    $region172: #{mean_shift_forward.1} parent=1 // pred_region
      _
    $region173: #{mean_shift_forward.1} parent=1 // pred_fallthru
      _
    // Predicated region
    $region174: #{mean_shift_forward.1} parent=1 // pred_check
      _
    $region175: #{mean_shift_forward.1} parent=1 // pred_check_branch
      %1846 = sbr.rel (0) target = $region177
    $region176: #{mean_shift_forward.1} parent=1 // pred_region
      _
    $region177: #{mean_shift_forward.1} parent=1 // pred_fallthru
      _
    // Predicated region
    $region178: #{mean_shift_forward.1} parent=1 // pred_check
      _
    $region179: #{mean_shift_forward.1} parent=1 // pred_check_branch
      %1848 = sbr.rel (0) target = $region181
    $region180: #{mean_shift_forward.1} parent=1 // pred_region
      _
    $region181: #{mean_shift_forward.1} parent=1 // pred_fallthru
      _
    // Predicated region
    $region182: #{mean_shift_forward.1} parent=1 // pred_check
      _
    $region183: #{mean_shift_forward.1} parent=1 // pred_check_branch
      %1850 = sbr.rel (0) target = $region185
    $region184: #{mean_shift_forward.1} parent=1 // pred_region
      _
    $region185: #{mean_shift_forward.1} parent=1 // pred_fallthru
      _
    // Predicated region
    $region186: #{mean_shift_forward.1} parent=1 // pred_check
      _
    $region187: #{mean_shift_forward.1} parent=1 // pred_check_branch
      %1852 = sbr.rel (0) target = $region189
    $region188: #{mean_shift_forward.1} parent=1 // pred_region
      _
    $region189: #{mean_shift_forward.1} parent=1 // pred_fallthru
      _
    %1853 = vsyncpa [#allocation4], 1

</llo_original>
